<compile_context>
chip_gen: v7x
topology: tpu7x:2x2x1
jax: 0.10.0
libtpu: 0.0.40
codegen_flags: <defaults>
</compile_context>

<pallas_src>
import functools

import jax
import jax.numpy as jnp
from jax import lax
from jax.experimental import pallas as pl
from jax.experimental.pallas import tpu as pltpu


def _knn_kernel(p_ref, q_ref, idx_ref, *, k, n_real, n_pad, chunk):
    """Streaming top-k KNN for one (batch, query-tile) grid cell.

    p_ref:   [1, n_pad, D]  candidate points, point-major (coords on lanes 0..D-1).
    q_ref:   [1, D, tM]     query points, channels-first (queries on lanes).
    idx_ref: [1, k, tM]     int32 neighbour indices (single lane-dense store).
    """
    q = q_ref[0]                                   # [D, tM]
    D = q.shape[0]
    t_m = q.shape[1]
    n_chunks = n_pad // chunk

    pos_inf = jnp.float32(jnp.inf)
    big_idx = jnp.int32(n_pad + k + 1)

    # Loop-invariant values hoisted out of the chunk loop (JAX does not CSE
    # broadcast_in_dim, so build them once).
    q_rows = [q[d:d + 1, :] for d in range(D)]                      # D x [1, tM]
    chunk_iota = lax.broadcasted_iota(jnp.int32, (chunk, t_m), 0)   # [chunk, tM]
    row_iota = lax.broadcasted_iota(jnp.int32, (k, t_m), 0)         # [k, tM]
    neg_inf_row = jnp.full((1, t_m), -jnp.inf, jnp.float32)
    neg_one_row = jnp.full((1, t_m), -1, jnp.int32)

    # Running top-k init: +inf distances, distinct out-of-range sentinel idxs.
    topk_d0 = jnp.full((k, t_m), jnp.inf, jnp.float32)
    topk_i0 = n_pad + row_iota

    def chunk_body(c, carry):
        topk_d, topk_i = carry
        base = pl.multiple_of(c * chunk, 8)
        pc = p_ref[0, pl.ds(base, chunk), :]                        # [chunk, D]

        # Squared distances of this chunk vs. the query tile (vreg-resident).
        dist = jnp.zeros((chunk, t_m), jnp.float32)
        for d in range(D):                                          # D is tiny & static
            diff = pc[:, d:d + 1] - q_rows[d]                       # [chunk, tM]
            dist = dist + diff * diff
        gidx = base + chunk_iota                                    # [chunk, tM]
        if n_pad != n_real:                                         # mask padded candidates
            dist = jnp.where(gidx < n_real, dist, pos_inf)

        # k smallest of (running top-k  U  chunk), lexicographic on (dist, idx)
        # so ties resolve to the lower index (matches a stable argsort).
        last_d, last_i = neg_inf_row, neg_one_row
        new_d, new_i = topk_d, topk_i
        for j in range(k):                                          # static unroll
            # chunk part
            v_c = (dist > last_d) | ((dist == last_d) & (gidx > last_i))
            m_c = jnp.min(jnp.where(v_c, dist, pos_inf), axis=0, keepdims=True)
            i_c = jnp.min(jnp.where(v_c & (dist == m_c), gidx, big_idx),
                          axis=0, keepdims=True)
            # running-top-k part (only k rows, sorted ascending)
            v_t = (topk_d > last_d) | ((topk_d == last_d) & (topk_i > last_i))
            m_t = jnp.min(jnp.where(v_t, topk_d, pos_inf), axis=0, keepdims=True)
            i_t = jnp.min(jnp.where(v_t & (topk_d == m_t), topk_i, big_idx),
                          axis=0, keepdims=True)
            # lexicographic min of the two winners
            take_c = (m_c < m_t) | ((m_c == m_t) & (i_c < i_t))
            last_d = jnp.where(take_c, m_c, m_t)
            last_i = jnp.where(take_c, i_c, i_t)
            sel = row_iota == j                                     # write row j
            new_d = jnp.where(sel, last_d, new_d)
            new_i = jnp.where(sel, last_i, new_i)
        return new_d, new_i

    if n_chunks <= 4:
        _, topk_i = lax.fori_loop(0, n_chunks, chunk_body,
                                  (topk_d0, topk_i0), unroll=True)
    else:
        _, topk_i = lax.fori_loop(0, n_chunks, chunk_body, (topk_d0, topk_i0))

    idx_ref[0, :, :] = topk_i      # one unmasked lane-dense [k, tM] store


def _round_up(x, m):
    return ((x + m - 1) // m) * m


def _pick_query_tile(m_pad, batch, cap):
    """Largest lane-aligned query tile dividing m_pad; when batch == 1, keep
    at least two grid cells so both v7x TensorCores are fed."""
    limit = min(cap, m_pad)
    if batch == 1 and m_pad >= 256:
        limit = min(limit, m_pad // 2)
    limit = max(128, (limit // 128) * 128)
    t = limit
    while m_pad % t != 0:
        t -= 128
    return t


def _vmem_limit_bytes(n_pad, t_m, k):
    """Scoped-VMEM hint from the actual double-buffered block footprints."""
    p_block = _round_up(n_pad, 8) * 128 * 4      # [n_pad, 3] f32, lane-padded to 128
    q_block = 8 * t_m * 4                        # [3, tM] f32, sublane-padded to 8
    o_block = _round_up(k, 8) * t_m * 4          # [k, tM] int32
    need = 2 * (p_block + q_block + o_block) + (8 << 20)   # + spill/scratch headroom
    # NOTE: fits comfortably for typical point-cloud N; very large N on v7x
    # (64 MiB VMEM) would want the channels-first p feed instead.
    return int(min(max(need, 16 << 20), 112 << 20))


def patcher_forward(p, q=None, *, k=8, query_tile_cap=256, cand_chunk=32):
    """Pallas/TPU equivalent of Patcher.forward (mode='knn').

    p: [B, dim, N] reference cloud; q: [B, dim, M] queries (defaults to p).
    Returns grouped patches [B, dim, M, k] (PyTorch layout).
    """
    if q is None:
        q = p
    p = p.astype(jnp.float32)
    q = q.astype(jnp.float32)
    B, D, N = p.shape
    M = q.shape[2]
    if k > N:
        raise ValueError(f"k={k} exceeds number of reference points N={N}")

    # Candidate axis: point-major, processed in chunks >= k; pad to a chunk multiple.
    chunk = max((cand_chunk // 8) * 8, _round_up(k, 8), 8)
    chunk = min(chunk, _round_up(N, 8))
    n_pad = _round_up(N, chunk)
    p_t = jnp.transpose(p, (0, 2, 1))                          # [B, N, D]
    if n_pad != N:
        p_t = jnp.pad(p_t, ((0, 0), (0, n_pad - N), (0, 0)))   # masked in-kernel

    # Query axis: pad to a lane multiple so every index store is unmasked.
    m_pad = _round_up(M, 128)
    t_m = _pick_query_tile(m_pad, B, query_tile_cap)
    q_pad = q if m_pad == M else jnp.pad(q, ((0, 0), (0, 0), (0, m_pad - M)))

    flops = B * m_pad * n_pad * (3 * D + 10 * k)
    bytes_accessed = 4 * B * (D * n_pad + D * m_pad + k * m_pad)

    idx = pl.pallas_call(
        functools.partial(_knn_kernel, k=k, n_real=N, n_pad=n_pad, chunk=chunk),
        out_shape=jax.ShapeDtypeStruct((B, k, m_pad), jnp.int32),
        grid_spec=pltpu.PrefetchScalarGridSpec(
            num_scalar_prefetch=0,
            grid=(B, m_pad // t_m),          # m innermost: p block stays resident
            in_specs=[
                pl.BlockSpec((1, n_pad, D), lambda b, m: (b, 0, 0)),
                pl.BlockSpec((1, D, t_m), lambda b, m: (b, 0, m)),
            ],
            out_specs=pl.BlockSpec((1, k, t_m), lambda b, m: (b, 0, m)),
        ),
        compiler_params=pltpu.CompilerParams(
            dimension_semantics=("parallel", "parallel"),
            vmem_limit_bytes=_vmem_limit_bytes(n_pad, t_m, k),
        ),
        cost_estimate=pl.CostEstimate(
            flops=int(flops), transcendentals=0,
            bytes_accessed=int(bytes_accessed)),
    )(p_t, q_pad)                                              # [B, k, m_pad] int32

    idx = idx[:, :, :M]                                        # drop padded query cols

    # Tiny value gather (dim*k*M elements) in plain JAX.
    def gather_one(p_b, idx_b):                                # [D, N], [k, M]
        return p_b[:, idx_b]                                   # [D, k, M]

    grouped = jax.vmap(gather_one)(p, idx)                     # [B, D, k, M]
    return jnp.transpose(grouped, (0, 1, 3, 2))                # [B, D, M, k]


def patcher_reference(p, q=None, *, k=8):
    """Pure-JAX reference of knn query + group. p: [B, dim, N]."""
    if q is None:
        q = p
    pt = jnp.transpose(p, (0, 2, 1))                           # [B, N, D]
    qt = jnp.transpose(q, (0, 2, 1))                           # [B, M, D]
    diff = qt[:, :, None, :] - pt[:, None, :, :]               # [B, M, N, D]
    dist = jnp.sum(diff * diff, axis=-1)                       # [B, M, N]
    idx = jnp.argsort(dist, axis=-1)[..., :k]                  # stable -> low-idx ties

    def gather_one(p_b, idx_b):
        return p_b[:, idx_b]                                   # [D, M, k]

    return jax.vmap(gather_one)(p, idx)                        # [B, D, M, k]


if __name__ == "__main__":
    k0, k1, k2 = jax.random.split(jax.random.PRNGKey(0), 3)

    # Case 1: module defaults (q = p), B=2, dim=3, N=16, k=8.
    B, DIM, N, K = 2, 3, 16, 8
    p = jax.random.normal(k0, (B, DIM, N), dtype=jnp.float32)
    grouped = jax.block_until_ready(patcher_forward(p, None, k=K))
    ref = patcher_reference(p, k=K)
    assert grouped.shape == (B, DIM, N, K), grouped.shape
    assert jnp.allclose(grouped, ref, atol=1e-5, rtol=1e-5), "mismatch (q = p)"

    # Case 2: distinct queries; exercises the candidate / query padding paths.
    N2, M2 = 20, 48
    p2 = jax.random.normal(k1, (B, DIM, N2), dtype=jnp.float32)
    q2 = jax.random.normal(k2, (B, DIM, M2), dtype=jnp.float32)
    grouped2 = jax.block_until_ready(patcher_forward(p2, q2, k=K))
    ref2 = patcher_reference(p2, q2, k=K)
    assert grouped2.shape == (B, DIM, M2, K), grouped2.shape
    assert jnp.allclose(grouped2, ref2, atol=1e-5, rtol=1e-5), "mismatch (q != p)"

    print("KERNEL_OK")
</pallas_src>

<mosaic_0001>
module attributes {stable_mosaic.version = 11 : i64} {
  func.func @_knn_kernel(%arg0: i32, %arg1: i32, %arg2: memref<1x16x3xf32, #tpu.memory_space<vmem>>, %arg3: memref<1x3x128xf32, #tpu.memory_space<vmem>>, %arg4: memref<1x8x128xi32, #tpu.memory_space<vmem>>) attributes {dimension_semantics = [#tpu.dimension_semantics<parallel>, #tpu.dimension_semantics<parallel>], iteration_bounds = array<i64: 2, 1>, scalar_prefetch = 0 : i64, scratch_operands = 0 : i64, tpu.core_type = #tpu.core_type<tc>, window_params = [{transform_indices = @transform_0, window_bounds = array<i64: 1, 16, 3>}, {transform_indices = @transform_1, window_bounds = array<i64: 1, 3, 128>}, {transform_indices = @transform_2, window_bounds = array<i64: 1, 8, 128>}]} {
    %c0 = arith.constant 0 : index
    %c0_0 = arith.constant 0 : index
    %c0_1 = arith.constant 0 : index
    %0 = vector.load %arg3[%c0, %c0_0, %c0_1] : memref<1x3x128xf32, #tpu.memory_space<vmem>>, vector<1x3x128xf32>
    %1 = vector.shape_cast %0 : vector<1x3x128xf32> to vector<3x128xf32>
    %2 = vector.extract_strided_slice %1 {offsets = [0, 0], sizes = [1, 128], strides = [1, 1]} : vector<3x128xf32> to vector<1x128xf32>
    %3 = vector.extract_strided_slice %1 {offsets = [1, 0], sizes = [1, 128], strides = [1, 1]} : vector<3x128xf32> to vector<1x128xf32>
    %4 = vector.extract_strided_slice %1 {offsets = [2, 0], sizes = [1, 128], strides = [1, 1]} : vector<3x128xf32> to vector<1x128xf32>
    %5 = tpu.iota {dimensions = array<i32: 0>} : vector<16x128xi32>
    %6 = tpu.iota {dimensions = array<i32: 0>} : vector<8x128xi32>
    %cst = arith.constant 0xFF800000 : f32
    %7 = vector.broadcast %cst : f32 to vector<1x128xf32>
    %c-1_i32 = arith.constant -1 : i32
    %8 = vector.broadcast %c-1_i32 : i32 to vector<1x128xi32>
    %cst_2 = arith.constant 0x7F800000 : f32
    %9 = vector.broadcast %cst_2 : f32 to vector<8x128xf32>
    %c16_i32 = arith.constant 16 : i32
    %10 = vector.broadcast %c16_i32 : i32 to vector<8x128xi32>
    %11 = arith.addi %10, %6 : vector<8x128xi32>
    %cst_3 = arith.constant 0x7F800000 : f32
    %c25_i32 = arith.constant 25 : i32
    %c0_i32 = arith.constant 0 : i32
    %c16_i32_4 = arith.constant 16 : i32
    %12 = arith.muli %c0_i32, %c16_i32_4 : i32
    %13 = tpu.assume_multiple %12, 8 : i32
    %c0_5 = arith.constant 0 : index
    %14 = arith.index_cast %13 : i32 to index
    %c0_6 = arith.constant 0 : index
    %15 = vector.load %arg2[%c0_5, %14, %c0_6] : memref<1x16x3xf32, #tpu.memory_space<vmem>>, vector<1x16x3xf32>
    %16 = vector.shape_cast %15 : vector<1x16x3xf32> to vector<16x3xf32>
    %cst_7 = arith.constant 0.000000e+00 : f32
    %17 = vector.broadcast %cst_7 : f32 to vector<16x128xf32>
    %18 = vector.extract_strided_slice %16 {offsets = [0, 0], sizes = [16, 1], strides = [1, 1]} : vector<16x3xf32> to vector<16x1xf32>
    %19 = vector.broadcast %18 : vector<16x1xf32> to vector<16x128xf32>
    %20 = vector.broadcast %2 : vector<1x128xf32> to vector<16x128xf32>
    %21 = arith.subf %19, %20 : vector<16x128xf32>
    %22 = arith.mulf %21, %21 : vector<16x128xf32>
    %23 = arith.addf %17, %22 : vector<16x128xf32>
    %24 = vector.extract_strided_slice %16 {offsets = [0, 1], sizes = [16, 1], strides = [1, 1]} : vector<16x3xf32> to vector<16x1xf32>
    %25 = vector.broadcast %24 : vector<16x1xf32> to vector<16x128xf32>
    %26 = vector.broadcast %3 : vector<1x128xf32> to vector<16x128xf32>
    %27 = arith.subf %25, %26 : vector<16x128xf32>
    %28 = arith.mulf %27, %27 : vector<16x128xf32>
    %29 = arith.addf %23, %28 : vector<16x128xf32>
    %30 = vector.extract_strided_slice %16 {offsets = [0, 2], sizes = [16, 1], strides = [1, 1]} : vector<16x3xf32> to vector<16x1xf32>
    %31 = vector.broadcast %30 : vector<16x1xf32> to vector<16x128xf32>
    %32 = vector.broadcast %4 : vector<1x128xf32> to vector<16x128xf32>
    %33 = arith.subf %31, %32 : vector<16x128xf32>
    %34 = arith.mulf %33, %33 : vector<16x128xf32>
    %35 = arith.addf %29, %34 : vector<16x128xf32>
    %36 = vector.broadcast %13 : i32 to vector<16x128xi32>
    %37 = arith.addi %36, %5 : vector<16x128xi32>
    %38 = vector.broadcast %7 : vector<1x128xf32> to vector<16x128xf32>
    %39 = arith.cmpf ogt, %35, %38 : vector<16x128xf32>
    %40 = vector.broadcast %7 : vector<1x128xf32> to vector<16x128xf32>
    %41 = arith.cmpf oeq, %35, %40 : vector<16x128xf32>
    %42 = vector.broadcast %8 : vector<1x128xi32> to vector<16x128xi32>
    %43 = arith.cmpi sgt, %37, %42 : vector<16x128xi32>
    %44 = arith.andi %41, %43 : vector<16x128xi1>
    %45 = arith.ori %39, %44 : vector<16x128xi1>
    %46 = vector.broadcast %cst_3 : f32 to vector<16x128xf32>
    %47 = arith.select %45, %35, %46 : vector<16x128xi1>, vector<16x128xf32>
    %cst_8 = arith.constant dense<0x7F800000> : vector<128xf32>
    %48 = vector.multi_reduction <minimumf>, %47, %cst_8 [0] : vector<16x128xf32> to vector<128xf32>
    %49 = vector.shape_cast %48 : vector<128xf32> to vector<1x128xf32>
    %50 = vector.broadcast %49 : vector<1x128xf32> to vector<16x128xf32>
    %51 = arith.cmpf oeq, %35, %50 : vector<16x128xf32>
    %52 = arith.andi %45, %51 : vector<16x128xi1>
    %53 = vector.broadcast %c25_i32 : i32 to vector<16x128xi32>
    %54 = arith.select %52, %37, %53 : vector<16x128xi1>, vector<16x128xi32>
    %cst_9 = arith.constant dense<2147483647> : vector<128xi32>
    %55 = vector.multi_reduction <minsi>, %54, %cst_9 [0] : vector<16x128xi32> to vector<128xi32>
    %56 = vector.shape_cast %55 : vector<128xi32> to vector<1x128xi32>
    %57 = vector.broadcast %7 : vector<1x128xf32> to vector<8x128xf32>
    %58 = arith.cmpf ogt, %9, %57 : vector<8x128xf32>
    %59 = vector.broadcast %7 : vector<1x128xf32> to vector<8x128xf32>
    %60 = arith.cmpf oeq, %9, %59 : vector<8x128xf32>
    %61 = vector.broadcast %8 : vector<1x128xi32> to vector<8x128xi32>
    %62 = arith.cmpi sgt, %11, %61 : vector<8x128xi32>
    %63 = arith.andi %60, %62 : vector<8x128xi1>
    %64 = arith.ori %58, %63 : vector<8x128xi1>
    %65 = vector.broadcast %cst_3 : f32 to vector<8x128xf32>
    %66 = arith.select %64, %9, %65 : vector<8x128xi1>, vector<8x128xf32>
    %cst_10 = arith.constant dense<0x7F800000> : vector<128xf32>
    %67 = vector.multi_reduction <minimumf>, %66, %cst_10 [0] : vector<8x128xf32> to vector<128xf32>
    %68 = vector.shape_cast %67 : vector<128xf32> to vector<1x128xf32>
    %69 = vector.broadcast %68 : vector<1x128xf32> to vector<8x128xf32>
    %70 = arith.cmpf oeq, %9, %69 : vector<8x128xf32>
    %71 = arith.andi %64, %70 : vector<8x128xi1>
    %72 = vector.broadcast %c25_i32 : i32 to vector<8x128xi32>
    %73 = arith.select %71, %11, %72 : vector<8x128xi1>, vector<8x128xi32>
    %cst_11 = arith.constant dense<2147483647> : vector<128xi32>
    %74 = vector.multi_reduction <minsi>, %73, %cst_11 [0] : vector<8x128xi32> to vector<128xi32>
    %75 = vector.shape_cast %74 : vector<128xi32> to vector<1x128xi32>
    %76 = arith.cmpf olt, %49, %68 : vector<1x128xf32>
    %77 = arith.cmpf oeq, %49, %68 : vector<1x128xf32>
    %78 = arith.cmpi slt, %56, %75 : vector<1x128xi32>
    %79 = arith.andi %77, %78 : vector<1x128xi1>
    %80 = arith.ori %76, %79 : vector<1x128xi1>
    %81 = arith.select %80, %49, %68 : vector<1x128xi1>, vector<1x128xf32>
    %82 = arith.select %80, %56, %75 : vector<1x128xi1>, vector<1x128xi32>
    %c0_i32_12 = arith.constant 0 : i32
    %83 = vector.broadcast %c0_i32_12 : i32 to vector<8x128xi32>
    %84 = arith.cmpi eq, %6, %83 : vector<8x128xi32>
    %85 = vector.shape_cast %81 : vector<1x128xf32> to vector<1x128xf32>
    %86 = vector.broadcast %85 : vector<1x128xf32> to vector<8x128xf32>
    %87 = arith.select %84, %86, %9 : vector<8x128xi1>, vector<8x128xf32>
    %88 = vector.shape_cast %82 : vector<1x128xi32> to vector<1x128xi32>
    %89 = vector.broadcast %88 : vector<1x128xi32> to vector<8x128xi32>
    %90 = arith.select %84, %89, %11 : vector<8x128xi1>, vector<8x128xi32>
    %91 = vector.broadcast %81 : vector<1x128xf32> to vector<16x128xf32>
    %92 = arith.cmpf ogt, %35, %91 : vector<16x128xf32>
    %93 = vector.broadcast %81 : vector<1x128xf32> to vector<16x128xf32>
    %94 = arith.cmpf oeq, %35, %93 : vector<16x128xf32>
    %95 = vector.broadcast %82 : vector<1x128xi32> to vector<16x128xi32>
    %96 = arith.cmpi sgt, %37, %95 : vector<16x128xi32>
    %97 = arith.andi %94, %96 : vector<16x128xi1>
    %98 = arith.ori %92, %97 : vector<16x128xi1>
    %99 = vector.broadcast %cst_3 : f32 to vector<16x128xf32>
    %100 = arith.select %98, %35, %99 : vector<16x128xi1>, vector<16x128xf32>
    %cst_13 = arith.constant dense<0x7F800000> : vector<128xf32>
    %101 = vector.multi_reduction <minimumf>, %100, %cst_13 [0] : vector<16x128xf32> to vector<128xf32>
    %102 = vector.shape_cast %101 : vector<128xf32> to vector<1x128xf32>
    %103 = vector.broadcast %102 : vector<1x128xf32> to vector<16x128xf32>
    %104 = arith.cmpf oeq, %35, %103 : vector<16x128xf32>
    %105 = arith.andi %98, %104 : vector<16x128xi1>
    %106 = vector.broadcast %c25_i32 : i32 to vector<16x128xi32>
    %107 = arith.select %105, %37, %106 : vector<16x128xi1>, vector<16x128xi32>
    %cst_14 = arith.constant dense<2147483647> : vector<128xi32>
    %108 = vector.multi_reduction <minsi>, %107, %cst_14 [0] : vector<16x128xi32> to vector<128xi32>
    %109 = vector.shape_cast %108 : vector<128xi32> to vector<1x128xi32>
    %110 = vector.broadcast %81 : vector<1x128xf32> to vector<8x128xf32>
    %111 = arith.cmpf ogt, %9, %110 : vector<8x128xf32>
    %112 = vector.broadcast %81 : vector<1x128xf32> to vector<8x128xf32>
    %113 = arith.cmpf oeq, %9, %112 : vector<8x128xf32>
    %114 = vector.broadcast %82 : vector<1x128xi32> to vector<8x128xi32>
    %115 = arith.cmpi sgt, %11, %114 : vector<8x128xi32>
    %116 = arith.andi %113, %115 : vector<8x128xi1>
    %117 = arith.ori %111, %116 : vector<8x128xi1>
    %118 = vector.broadcast %cst_3 : f32 to vector<8x128xf32>
    %119 = arith.select %117, %9, %118 : vector<8x128xi1>, vector<8x128xf32>
    %cst_15 = arith.constant dense<0x7F800000> : vector<128xf32>
    %120 = vector.multi_reduction <minimumf>, %119, %cst_15 [0] : vector<8x128xf32> to vector<128xf32>
    %121 = vector.shape_cast %120 : vector<128xf32> to vector<1x128xf32>
    %122 = vector.broadcast %121 : vector<1x128xf32> to vector<8x128xf32>
    %123 = arith.cmpf oeq, %9, %122 : vector<8x128xf32>
    %124 = arith.andi %117, %123 : vector<8x128xi1>
    %125 = vector.broadcast %c25_i32 : i32 to vector<8x128xi32>
    %126 = arith.select %124, %11, %125 : vector<8x128xi1>, vector<8x128xi32>
    %cst_16 = arith.constant dense<2147483647> : vector<128xi32>
    %127 = vector.multi_reduction <minsi>, %126, %cst_16 [0] : vector<8x128xi32> to vector<128xi32>
    %128 = vector.shape_cast %127 : vector<128xi32> to vector<1x128xi32>
    %129 = arith.cmpf olt, %102, %121 : vector<1x128xf32>
    %130 = arith.cmpf oeq, %102, %121 : vector<1x128xf32>
    %131 = arith.cmpi slt, %109, %128 : vector<1x128xi32>
    %132 = arith.andi %130, %131 : vector<1x128xi1>
    %133 = arith.ori %129, %132 : vector<1x128xi1>
    %134 = arith.select %133, %102, %121 : vector<1x128xi1>, vector<1x128xf32>
    %135 = arith.select %133, %109, %128 : vector<1x128xi1>, vector<1x128xi32>
    %c1_i32 = arith.constant 1 : i32
    %136 = vector.broadcast %c1_i32 : i32 to vector<8x128xi32>
    %137 = arith.cmpi eq, %6, %136 : vector<8x128xi32>
    %138 = vector.shape_cast %134 : vector<1x128xf32> to vector<1x128xf32>
    %139 = vector.broadcast %138 : vector<1x128xf32> to vector<8x128xf32>
    %140 = arith.select %137, %139, %87 : vector<8x128xi1>, vector<8x128xf32>
    %141 = vector.shape_cast %135 : vector<1x128xi32> to vector<1x128xi32>
    %142 = vector.broadcast %141 : vector<1x128xi32> to vector<8x128xi32>
    %143 = arith.select %137, %142, %90 : vector<8x128xi1>, vector<8x128xi32>
    %144 = vector.broadcast %134 : vector<1x128xf32> to vector<16x128xf32>
    %145 = arith.cmpf ogt, %35, %144 : vector<16x128xf32>
    %146 = vector.broadcast %134 : vector<1x128xf32> to vector<16x128xf32>
    %147 = arith.cmpf oeq, %35, %146 : vector<16x128xf32>
    %148 = vector.broadcast %135 : vector<1x128xi32> to vector<16x128xi32>
    %149 = arith.cmpi sgt, %37, %148 : vector<16x128xi32>
    %150 = arith.andi %147, %149 : vector<16x128xi1>
    %151 = arith.ori %145, %150 : vector<16x128xi1>
    %152 = vector.broadcast %cst_3 : f32 to vector<16x128xf32>
    %153 = arith.select %151, %35, %152 : vector<16x128xi1>, vector<16x128xf32>
    %cst_17 = arith.constant dense<0x7F800000> : vector<128xf32>
    %154 = vector.multi_reduction <minimumf>, %153, %cst_17 [0] : vector<16x128xf32> to vector<128xf32>
    %155 = vector.shape_cast %154 : vector<128xf32> to vector<1x128xf32>
    %156 = vector.broadcast %155 : vector<1x128xf32> to vector<16x128xf32>
    %157 = arith.cmpf oeq, %35, %156 : vector<16x128xf32>
    %158 = arith.andi %151, %157 : vector<16x128xi1>
    %159 = vector.broadcast %c25_i32 : i32 to vector<16x128xi32>
    %160 = arith.select %158, %37, %159 : vector<16x128xi1>, vector<16x128xi32>
    %cst_18 = arith.constant dense<2147483647> : vector<128xi32>
    %161 = vector.multi_reduction <minsi>, %160, %cst_18 [0] : vector<16x128xi32> to vector<128xi32>
    %162 = vector.shape_cast %161 : vector<128xi32> to vector<1x128xi32>
    %163 = vector.broadcast %134 : vector<1x128xf32> to vector<8x128xf32>
    %164 = arith.cmpf ogt, %9, %163 : vector<8x128xf32>
    %165 = vector.broadcast %134 : vector<1x128xf32> to vector<8x128xf32>
    %166 = arith.cmpf oeq, %9, %165 : vector<8x128xf32>
    %167 = vector.broadcast %135 : vector<1x128xi32> to vector<8x128xi32>
    %168 = arith.cmpi sgt, %11, %167 : vector<8x128xi32>
    %169 = arith.andi %166, %168 : vector<8x128xi1>
    %170 = arith.ori %164, %169 : vector<8x128xi1>
    %171 = vector.broadcast %cst_3 : f32 to vector<8x128xf32>
    %172 = arith.select %170, %9, %171 : vector<8x128xi1>, vector<8x128xf32>
    %cst_19 = arith.constant dense<0x7F800000> : vector<128xf32>
    %173 = vector.multi_reduction <minimumf>, %172, %cst_19 [0] : vector<8x128xf32> to vector<128xf32>
    %174 = vector.shape_cast %173 : vector<128xf32> to vector<1x128xf32>
    %175 = vector.broadcast %174 : vector<1x128xf32> to vector<8x128xf32>
    %176 = arith.cmpf oeq, %9, %175 : vector<8x128xf32>
    %177 = arith.andi %170, %176 : vector<8x128xi1>
    %178 = vector.broadcast %c25_i32 : i32 to vector<8x128xi32>
    %179 = arith.select %177, %11, %178 : vector<8x128xi1>, vector<8x128xi32>
    %cst_20 = arith.constant dense<2147483647> : vector<128xi32>
    %180 = vector.multi_reduction <minsi>, %179, %cst_20 [0] : vector<8x128xi32> to vector<128xi32>
    %181 = vector.shape_cast %180 : vector<128xi32> to vector<1x128xi32>
    %182 = arith.cmpf olt, %155, %174 : vector<1x128xf32>
    %183 = arith.cmpf oeq, %155, %174 : vector<1x128xf32>
    %184 = arith.cmpi slt, %162, %181 : vector<1x128xi32>
    %185 = arith.andi %183, %184 : vector<1x128xi1>
    %186 = arith.ori %182, %185 : vector<1x128xi1>
    %187 = arith.select %186, %155, %174 : vector<1x128xi1>, vector<1x128xf32>
    %188 = arith.select %186, %162, %181 : vector<1x128xi1>, vector<1x128xi32>
    %c2_i32 = arith.constant 2 : i32
    %189 = vector.broadcast %c2_i32 : i32 to vector<8x128xi32>
    %190 = arith.cmpi eq, %6, %189 : vector<8x128xi32>
    %191 = vector.shape_cast %187 : vector<1x128xf32> to vector<1x128xf32>
    %192 = vector.broadcast %191 : vector<1x128xf32> to vector<8x128xf32>
    %193 = arith.select %190, %192, %140 : vector<8x128xi1>, vector<8x128xf32>
    %194 = vector.shape_cast %188 : vector<1x128xi32> to vector<1x128xi32>
    %195 = vector.broadcast %194 : vector<1x128xi32> to vector<8x128xi32>
    %196 = arith.select %190, %195, %143 : vector<8x128xi1>, vector<8x128xi32>
    %197 = vector.broadcast %187 : vector<1x128xf32> to vector<16x128xf32>
    %198 = arith.cmpf ogt, %35, %197 : vector<16x128xf32>
    %199 = vector.broadcast %187 : vector<1x128xf32> to vector<16x128xf32>
    %200 = arith.cmpf oeq, %35, %199 : vector<16x128xf32>
    %201 = vector.broadcast %188 : vector<1x128xi32> to vector<16x128xi32>
    %202 = arith.cmpi sgt, %37, %201 : vector<16x128xi32>
    %203 = arith.andi %200, %202 : vector<16x128xi1>
    %204 = arith.ori %198, %203 : vector<16x128xi1>
    %205 = vector.broadcast %cst_3 : f32 to vector<16x128xf32>
    %206 = arith.select %204, %35, %205 : vector<16x128xi1>, vector<16x128xf32>
    %cst_21 = arith.constant dense<0x7F800000> : vector<128xf32>
    %207 = vector.multi_reduction <minimumf>, %206, %cst_21 [0] : vector<16x128xf32> to vector<128xf32>
    %208 = vector.shape_cast %207 : vector<128xf32> to vector<1x128xf32>
    %209 = vector.broadcast %208 : vector<1x128xf32> to vector<16x128xf32>
    %210 = arith.cmpf oeq, %35, %209 : vector<16x128xf32>
    %211 = arith.andi %204, %210 : vector<16x128xi1>
    %212 = vector.broadcast %c25_i32 : i32 to vector<16x128xi32>
    %213 = arith.select %211, %37, %212 : vector<16x128xi1>, vector<16x128xi32>
    %cst_22 = arith.constant dense<2147483647> : vector<128xi32>
    %214 = vector.multi_reduction <minsi>, %213, %cst_22 [0] : vector<16x128xi32> to vector<128xi32>
    %215 = vector.shape_cast %214 : vector<128xi32> to vector<1x128xi32>
    %216 = vector.broadcast %187 : vector<1x128xf32> to vector<8x128xf32>
    %217 = arith.cmpf ogt, %9, %216 : vector<8x128xf32>
    %218 = vector.broadcast %187 : vector<1x128xf32> to vector<8x128xf32>
    %219 = arith.cmpf oeq, %9, %218 : vector<8x128xf32>
    %220 = vector.broadcast %188 : vector<1x128xi32> to vector<8x128xi32>
    %221 = arith.cmpi sgt, %11, %220 : vector<8x128xi32>
    %222 = arith.andi %219, %221 : vector<8x128xi1>
    %223 = arith.ori %217, %222 : vector<8x128xi1>
    %224 = vector.broadcast %cst_3 : f32 to vector<8x128xf32>
    %225 = arith.select %223, %9, %224 : vector<8x128xi1>, vector<8x128xf32>
    %cst_23 = arith.constant dense<0x7F800000> : vector<128xf32>
    %226 = vector.multi_reduction <minimumf>, %225, %cst_23 [0] : vector<8x128xf32> to vector<128xf32>
    %227 = vector.shape_cast %226 : vector<128xf32> to vector<1x128xf32>
    %228 = vector.broadcast %227 : vector<1x128xf32> to vector<8x128xf32>
    %229 = arith.cmpf oeq, %9, %228 : vector<8x128xf32>
    %230 = arith.andi %223, %229 : vector<8x128xi1>
    %231 = vector.broadcast %c25_i32 : i32 to vector<8x128xi32>
    %232 = arith.select %230, %11, %231 : vector<8x128xi1>, vector<8x128xi32>
    %cst_24 = arith.constant dense<2147483647> : vector<128xi32>
    %233 = vector.multi_reduction <minsi>, %232, %cst_24 [0] : vector<8x128xi32> to vector<128xi32>
    %234 = vector.shape_cast %233 : vector<128xi32> to vector<1x128xi32>
    %235 = arith.cmpf olt, %208, %227 : vector<1x128xf32>
    %236 = arith.cmpf oeq, %208, %227 : vector<1x128xf32>
    %237 = arith.cmpi slt, %215, %234 : vector<1x128xi32>
    %238 = arith.andi %236, %237 : vector<1x128xi1>
    %239 = arith.ori %235, %238 : vector<1x128xi1>
    %240 = arith.select %239, %208, %227 : vector<1x128xi1>, vector<1x128xf32>
    %241 = arith.select %239, %215, %234 : vector<1x128xi1>, vector<1x128xi32>
    %c3_i32 = arith.constant 3 : i32
    %242 = vector.broadcast %c3_i32 : i32 to vector<8x128xi32>
    %243 = arith.cmpi eq, %6, %242 : vector<8x128xi32>
    %244 = vector.shape_cast %240 : vector<1x128xf32> to vector<1x128xf32>
    %245 = vector.broadcast %244 : vector<1x128xf32> to vector<8x128xf32>
    %246 = arith.select %243, %245, %193 : vector<8x128xi1>, vector<8x128xf32>
    %247 = vector.shape_cast %241 : vector<1x128xi32> to vector<1x128xi32>
    %248 = vector.broadcast %247 : vector<1x128xi32> to vector<8x128xi32>
    %249 = arith.select %243, %248, %196 : vector<8x128xi1>, vector<8x128xi32>
    %250 = vector.broadcast %240 : vector<1x128xf32> to vector<16x128xf32>
    %251 = arith.cmpf ogt, %35, %250 : vector<16x128xf32>
    %252 = vector.broadcast %240 : vector<1x128xf32> to vector<16x128xf32>
    %253 = arith.cmpf oeq, %35, %252 : vector<16x128xf32>
    %254 = vector.broadcast %241 : vector<1x128xi32> to vector<16x128xi32>
    %255 = arith.cmpi sgt, %37, %254 : vector<16x128xi32>
    %256 = arith.andi %253, %255 : vector<16x128xi1>
    %257 = arith.ori %251, %256 : vector<16x128xi1>
    %258 = vector.broadcast %cst_3 : f32 to vector<16x128xf32>
    %259 = arith.select %257, %35, %258 : vector<16x128xi1>, vector<16x128xf32>
    %cst_25 = arith.constant dense<0x7F800000> : vector<128xf32>
    %260 = vector.multi_reduction <minimumf>, %259, %cst_25 [0] : vector<16x128xf32> to vector<128xf32>
    %261 = vector.shape_cast %260 : vector<128xf32> to vector<1x128xf32>
    %262 = vector.broadcast %261 : vector<1x128xf32> to vector<16x128xf32>
    %263 = arith.cmpf oeq, %35, %262 : vector<16x128xf32>
    %264 = arith.andi %257, %263 : vector<16x128xi1>
    %265 = vector.broadcast %c25_i32 : i32 to vector<16x128xi32>
    %266 = arith.select %264, %37, %265 : vector<16x128xi1>, vector<16x128xi32>
    %cst_26 = arith.constant dense<2147483647> : vector<128xi32>
    %267 = vector.multi_reduction <minsi>, %266, %cst_26 [0] : vector<16x128xi32> to vector<128xi32>
    %268 = vector.shape_cast %267 : vector<128xi32> to vector<1x128xi32>
    %269 = vector.broadcast %240 : vector<1x128xf32> to vector<8x128xf32>
    %270 = arith.cmpf ogt, %9, %269 : vector<8x128xf32>
    %271 = vector.broadcast %240 : vector<1x128xf32> to vector<8x128xf32>
    %272 = arith.cmpf oeq, %9, %271 : vector<8x128xf32>
    %273 = vector.broadcast %241 : vector<1x128xi32> to vector<8x128xi32>
    %274 = arith.cmpi sgt, %11, %273 : vector<8x128xi32>
    %275 = arith.andi %272, %274 : vector<8x128xi1>
    %276 = arith.ori %270, %275 : vector<8x128xi1>
    %277 = vector.broadcast %cst_3 : f32 to vector<8x128xf32>
    %278 = arith.select %276, %9, %277 : vector<8x128xi1>, vector<8x128xf32>
    %cst_27 = arith.constant dense<0x7F800000> : vector<128xf32>
    %279 = vector.multi_reduction <minimumf>, %278, %cst_27 [0] : vector<8x128xf32> to vector<128xf32>
    %280 = vector.shape_cast %279 : vector<128xf32> to vector<1x128xf32>
    %281 = vector.broadcast %280 : vector<1x128xf32> to vector<8x128xf32>
    %282 = arith.cmpf oeq, %9, %281 : vector<8x128xf32>
    %283 = arith.andi %276, %282 : vector<8x128xi1>
    %284 = vector.broadcast %c25_i32 : i32 to vector<8x128xi32>
    %285 = arith.select %283, %11, %284 : vector<8x128xi1>, vector<8x128xi32>
    %cst_28 = arith.constant dense<2147483647> : vector<128xi32>
    %286 = vector.multi_reduction <minsi>, %285, %cst_28 [0] : vector<8x128xi32> to vector<128xi32>
    %287 = vector.shape_cast %286 : vector<128xi32> to vector<1x128xi32>
    %288 = arith.cmpf olt, %261, %280 : vector<1x128xf32>
    %289 = arith.cmpf oeq, %261, %280 : vector<1x128xf32>
    %290 = arith.cmpi slt, %268, %287 : vector<1x128xi32>
    %291 = arith.andi %289, %290 : vector<1x128xi1>
    %292 = arith.ori %288, %291 : vector<1x128xi1>
    %293 = arith.select %292, %261, %280 : vector<1x128xi1>, vector<1x128xf32>
    %294 = arith.select %292, %268, %287 : vector<1x128xi1>, vector<1x128xi32>
    %c4_i32 = arith.constant 4 : i32
    %295 = vector.broadcast %c4_i32 : i32 to vector<8x128xi32>
    %296 = arith.cmpi eq, %6, %295 : vector<8x128xi32>
    %297 = vector.shape_cast %293 : vector<1x128xf32> to vector<1x128xf32>
    %298 = vector.broadcast %297 : vector<1x128xf32> to vector<8x128xf32>
    %299 = arith.select %296, %298, %246 : vector<8x128xi1>, vector<8x128xf32>
    %300 = vector.shape_cast %294 : vector<1x128xi32> to vector<1x128xi32>
    %301 = vector.broadcast %300 : vector<1x128xi32> to vector<8x128xi32>
    %302 = arith.select %296, %301, %249 : vector<8x128xi1>, vector<8x128xi32>
    %303 = vector.broadcast %293 : vector<1x128xf32> to vector<16x128xf32>
    %304 = arith.cmpf ogt, %35, %303 : vector<16x128xf32>
    %305 = vector.broadcast %293 : vector<1x128xf32> to vector<16x128xf32>
    %306 = arith.cmpf oeq, %35, %305 : vector<16x128xf32>
    %307 = vector.broadcast %294 : vector<1x128xi32> to vector<16x128xi32>
    %308 = arith.cmpi sgt, %37, %307 : vector<16x128xi32>
    %309 = arith.andi %306, %308 : vector<16x128xi1>
    %310 = arith.ori %304, %309 : vector<16x128xi1>
    %311 = vector.broadcast %cst_3 : f32 to vector<16x128xf32>
    %312 = arith.select %310, %35, %311 : vector<16x128xi1>, vector<16x128xf32>
    %cst_29 = arith.constant dense<0x7F800000> : vector<128xf32>
    %313 = vector.multi_reduction <minimumf>, %312, %cst_29 [0] : vector<16x128xf32> to vector<128xf32>
    %314 = vector.shape_cast %313 : vector<128xf32> to vector<1x128xf32>
    %315 = vector.broadcast %314 : vector<1x128xf32> to vector<16x128xf32>
    %316 = arith.cmpf oeq, %35, %315 : vector<16x128xf32>
    %317 = arith.andi %310, %316 : vector<16x128xi1>
    %318 = vector.broadcast %c25_i32 : i32 to vector<16x128xi32>
    %319 = arith.select %317, %37, %318 : vector<16x128xi1>, vector<16x128xi32>
    %cst_30 = arith.constant dense<2147483647> : vector<128xi32>
    %320 = vector.multi_reduction <minsi>, %319, %cst_30 [0] : vector<16x128xi32> to vector<128xi32>
    %321 = vector.shape_cast %320 : vector<128xi32> to vector<1x128xi32>
    %322 = vector.broadcast %293 : vector<1x128xf32> to vector<8x128xf32>
    %323 = arith.cmpf ogt, %9, %322 : vector<8x128xf32>
    %324 = vector.broadcast %293 : vector<1x128xf32> to vector<8x128xf32>
    %325 = arith.cmpf oeq, %9, %324 : vector<8x128xf32>
    %326 = vector.broadcast %294 : vector<1x128xi32> to vector<8x128xi32>
    %327 = arith.cmpi sgt, %11, %326 : vector<8x128xi32>
    %328 = arith.andi %325, %327 : vector<8x128xi1>
    %329 = arith.ori %323, %328 : vector<8x128xi1>
    %330 = vector.broadcast %cst_3 : f32 to vector<8x128xf32>
    %331 = arith.select %329, %9, %330 : vector<8x128xi1>, vector<8x128xf32>
    %cst_31 = arith.constant dense<0x7F800000> : vector<128xf32>
    %332 = vector.multi_reduction <minimumf>, %331, %cst_31 [0] : vector<8x128xf32> to vector<128xf32>
    %333 = vector.shape_cast %332 : vector<128xf32> to vector<1x128xf32>
    %334 = vector.broadcast %333 : vector<1x128xf32> to vector<8x128xf32>
    %335 = arith.cmpf oeq, %9, %334 : vector<8x128xf32>
    %336 = arith.andi %329, %335 : vector<8x128xi1>
    %337 = vector.broadcast %c25_i32 : i32 to vector<8x128xi32>
    %338 = arith.select %336, %11, %337 : vector<8x128xi1>, vector<8x128xi32>
    %cst_32 = arith.constant dense<2147483647> : vector<128xi32>
    %339 = vector.multi_reduction <minsi>, %338, %cst_32 [0] : vector<8x128xi32> to vector<128xi32>
    %340 = vector.shape_cast %339 : vector<128xi32> to vector<1x128xi32>
    %341 = arith.cmpf olt, %314, %333 : vector<1x128xf32>
    %342 = arith.cmpf oeq, %314, %333 : vector<1x128xf32>
    %343 = arith.cmpi slt, %321, %340 : vector<1x128xi32>
    %344 = arith.andi %342, %343 : vector<1x128xi1>
    %345 = arith.ori %341, %344 : vector<1x128xi1>
    %346 = arith.select %345, %314, %333 : vector<1x128xi1>, vector<1x128xf32>
    %347 = arith.select %345, %321, %340 : vector<1x128xi1>, vector<1x128xi32>
    %c5_i32 = arith.constant 5 : i32
    %348 = vector.broadcast %c5_i32 : i32 to vector<8x128xi32>
    %349 = arith.cmpi eq, %6, %348 : vector<8x128xi32>
    %350 = vector.shape_cast %346 : vector<1x128xf32> to vector<1x128xf32>
    %351 = vector.broadcast %350 : vector<1x128xf32> to vector<8x128xf32>
    %352 = arith.select %349, %351, %299 : vector<8x128xi1>, vector<8x128xf32>
    %353 = vector.shape_cast %347 : vector<1x128xi32> to vector<1x128xi32>
    %354 = vector.broadcast %353 : vector<1x128xi32> to vector<8x128xi32>
    %355 = arith.select %349, %354, %302 : vector<8x128xi1>, vector<8x128xi32>
    %356 = vector.broadcast %346 : vector<1x128xf32> to vector<16x128xf32>
    %357 = arith.cmpf ogt, %35, %356 : vector<16x128xf32>
    %358 = vector.broadcast %346 : vector<1x128xf32> to vector<16x128xf32>
    %359 = arith.cmpf oeq, %35, %358 : vector<16x128xf32>
    %360 = vector.broadcast %347 : vector<1x128xi32> to vector<16x128xi32>
    %361 = arith.cmpi sgt, %37, %360 : vector<16x128xi32>
    %362 = arith.andi %359, %361 : vector<16x128xi1>
    %363 = arith.ori %357, %362 : vector<16x128xi1>
    %364 = vector.broadcast %cst_3 : f32 to vector<16x128xf32>
    %365 = arith.select %363, %35, %364 : vector<16x128xi1>, vector<16x128xf32>
    %cst_33 = arith.constant dense<0x7F800000> : vector<128xf32>
    %366 = vector.multi_reduction <minimumf>, %365, %cst_33 [0] : vector<16x128xf32> to vector<128xf32>
    %367 = vector.shape_cast %366 : vector<128xf32> to vector<1x128xf32>
    %368 = vector.broadcast %367 : vector<1x128xf32> to vector<16x128xf32>
    %369 = arith.cmpf oeq, %35, %368 : vector<16x128xf32>
    %370 = arith.andi %363, %369 : vector<16x128xi1>
    %371 = vector.broadcast %c25_i32 : i32 to vector<16x128xi32>
    %372 = arith.select %370, %37, %371 : vector<16x128xi1>, vector<16x128xi32>
    %cst_34 = arith.constant dense<2147483647> : vector<128xi32>
    %373 = vector.multi_reduction <minsi>, %372, %cst_34 [0] : vector<16x128xi32> to vector<128xi32>
    %374 = vector.shape_cast %373 : vector<128xi32> to vector<1x128xi32>
    %375 = vector.broadcast %346 : vector<1x128xf32> to vector<8x128xf32>
    %376 = arith.cmpf ogt, %9, %375 : vector<8x128xf32>
    %377 = vector.broadcast %346 : vector<1x128xf32> to vector<8x128xf32>
    %378 = arith.cmpf oeq, %9, %377 : vector<8x128xf32>
    %379 = vector.broadcast %347 : vector<1x128xi32> to vector<8x128xi32>
    %380 = arith.cmpi sgt, %11, %379 : vector<8x128xi32>
    %381 = arith.andi %378, %380 : vector<8x128xi1>
    %382 = arith.ori %376, %381 : vector<8x128xi1>
    %383 = vector.broadcast %cst_3 : f32 to vector<8x128xf32>
    %384 = arith.select %382, %9, %383 : vector<8x128xi1>, vector<8x128xf32>
    %cst_35 = arith.constant dense<0x7F800000> : vector<128xf32>
    %385 = vector.multi_reduction <minimumf>, %384, %cst_35 [0] : vector<8x128xf32> to vector<128xf32>
    %386 = vector.shape_cast %385 : vector<128xf32> to vector<1x128xf32>
    %387 = vector.broadcast %386 : vector<1x128xf32> to vector<8x128xf32>
    %388 = arith.cmpf oeq, %9, %387 : vector<8x128xf32>
    %389 = arith.andi %382, %388 : vector<8x128xi1>
    %390 = vector.broadcast %c25_i32 : i32 to vector<8x128xi32>
    %391 = arith.select %389, %11, %390 : vector<8x128xi1>, vector<8x128xi32>
    %cst_36 = arith.constant dense<2147483647> : vector<128xi32>
    %392 = vector.multi_reduction <minsi>, %391, %cst_36 [0] : vector<8x128xi32> to vector<128xi32>
    %393 = vector.shape_cast %392 : vector<128xi32> to vector<1x128xi32>
    %394 = arith.cmpf olt, %367, %386 : vector<1x128xf32>
    %395 = arith.cmpf oeq, %367, %386 : vector<1x128xf32>
    %396 = arith.cmpi slt, %374, %393 : vector<1x128xi32>
    %397 = arith.andi %395, %396 : vector<1x128xi1>
    %398 = arith.ori %394, %397 : vector<1x128xi1>
    %399 = arith.select %398, %367, %386 : vector<1x128xi1>, vector<1x128xf32>
    %400 = arith.select %398, %374, %393 : vector<1x128xi1>, vector<1x128xi32>
    %c6_i32 = arith.constant 6 : i32
    %401 = vector.broadcast %c6_i32 : i32 to vector<8x128xi32>
    %402 = arith.cmpi eq, %6, %401 : vector<8x128xi32>
    %403 = vector.shape_cast %399 : vector<1x128xf32> to vector<1x128xf32>
    %404 = vector.broadcast %403 : vector<1x128xf32> to vector<8x128xf32>
    %405 = arith.select %402, %404, %352 : vector<8x128xi1>, vector<8x128xf32>
    %406 = vector.shape_cast %400 : vector<1x128xi32> to vector<1x128xi32>
    %407 = vector.broadcast %406 : vector<1x128xi32> to vector<8x128xi32>
    %408 = arith.select %402, %407, %355 : vector<8x128xi1>, vector<8x128xi32>
    %409 = vector.broadcast %399 : vector<1x128xf32> to vector<16x128xf32>
    %410 = arith.cmpf ogt, %35, %409 : vector<16x128xf32>
    %411 = vector.broadcast %399 : vector<1x128xf32> to vector<16x128xf32>
    %412 = arith.cmpf oeq, %35, %411 : vector<16x128xf32>
    %413 = vector.broadcast %400 : vector<1x128xi32> to vector<16x128xi32>
    %414 = arith.cmpi sgt, %37, %413 : vector<16x128xi32>
    %415 = arith.andi %412, %414 : vector<16x128xi1>
    %416 = arith.ori %410, %415 : vector<16x128xi1>
    %417 = vector.broadcast %cst_3 : f32 to vector<16x128xf32>
    %418 = arith.select %416, %35, %417 : vector<16x128xi1>, vector<16x128xf32>
    %cst_37 = arith.constant dense<0x7F800000> : vector<128xf32>
    %419 = vector.multi_reduction <minimumf>, %418, %cst_37 [0] : vector<16x128xf32> to vector<128xf32>
    %420 = vector.shape_cast %419 : vector<128xf32> to vector<1x128xf32>
    %421 = vector.broadcast %420 : vector<1x128xf32> to vector<16x128xf32>
    %422 = arith.cmpf oeq, %35, %421 : vector<16x128xf32>
    %423 = arith.andi %416, %422 : vector<16x128xi1>
    %424 = vector.broadcast %c25_i32 : i32 to vector<16x128xi32>
    %425 = arith.select %423, %37, %424 : vector<16x128xi1>, vector<16x128xi32>
    %cst_38 = arith.constant dense<2147483647> : vector<128xi32>
    %426 = vector.multi_reduction <minsi>, %425, %cst_38 [0] : vector<16x128xi32> to vector<128xi32>
    %427 = vector.shape_cast %426 : vector<128xi32> to vector<1x128xi32>
    %428 = vector.broadcast %399 : vector<1x128xf32> to vector<8x128xf32>
    %429 = arith.cmpf ogt, %9, %428 : vector<8x128xf32>
    %430 = vector.broadcast %399 : vector<1x128xf32> to vector<8x128xf32>
    %431 = arith.cmpf oeq, %9, %430 : vector<8x128xf32>
    %432 = vector.broadcast %400 : vector<1x128xi32> to vector<8x128xi32>
    %433 = arith.cmpi sgt, %11, %432 : vector<8x128xi32>
    %434 = arith.andi %431, %433 : vector<8x128xi1>
    %435 = arith.ori %429, %434 : vector<8x128xi1>
    %436 = vector.broadcast %cst_3 : f32 to vector<8x128xf32>
    %437 = arith.select %435, %9, %436 : vector<8x128xi1>, vector<8x128xf32>
    %cst_39 = arith.constant dense<0x7F800000> : vector<128xf32>
    %438 = vector.multi_reduction <minimumf>, %437, %cst_39 [0] : vector<8x128xf32> to vector<128xf32>
    %439 = vector.shape_cast %438 : vector<128xf32> to vector<1x128xf32>
    %440 = vector.broadcast %439 : vector<1x128xf32> to vector<8x128xf32>
    %441 = arith.cmpf oeq, %9, %440 : vector<8x128xf32>
    %442 = arith.andi %435, %441 : vector<8x128xi1>
    %443 = vector.broadcast %c25_i32 : i32 to vector<8x128xi32>
    %444 = arith.select %442, %11, %443 : vector<8x128xi1>, vector<8x128xi32>
    %cst_40 = arith.constant dense<2147483647> : vector<128xi32>
    %445 = vector.multi_reduction <minsi>, %444, %cst_40 [0] : vector<8x128xi32> to vector<128xi32>
    %446 = vector.shape_cast %445 : vector<128xi32> to vector<1x128xi32>
    %447 = arith.cmpf olt, %420, %439 : vector<1x128xf32>
    %448 = arith.cmpf oeq, %420, %439 : vector<1x128xf32>
    %449 = arith.cmpi slt, %427, %446 : vector<1x128xi32>
    %450 = arith.andi %448, %449 : vector<1x128xi1>
    %451 = arith.ori %447, %450 : vector<1x128xi1>
    %452 = arith.select %451, %420, %439 : vector<1x128xi1>, vector<1x128xf32>
    %453 = arith.select %451, %427, %446 : vector<1x128xi1>, vector<1x128xi32>
    %c7_i32 = arith.constant 7 : i32
    %454 = vector.broadcast %c7_i32 : i32 to vector<8x128xi32>
    %455 = arith.cmpi eq, %6, %454 : vector<8x128xi32>
    %456 = vector.shape_cast %452 : vector<1x128xf32> to vector<1x128xf32>
    %457 = vector.broadcast %456 : vector<1x128xf32> to vector<8x128xf32>
    %458 = arith.select %455, %457, %405 : vector<8x128xi1>, vector<8x128xf32>
    %459 = vector.shape_cast %453 : vector<1x128xi32> to vector<1x128xi32>
    %460 = vector.broadcast %459 : vector<1x128xi32> to vector<8x128xi32>
    %461 = arith.select %455, %460, %408 : vector<8x128xi1>, vector<8x128xi32>
    %c1_i32_41 = arith.constant 1 : i32
    %c0_42 = arith.constant 0 : index
    %c0_43 = arith.constant 0 : index
    %c0_44 = arith.constant 0 : index
    %462 = vector.load %arg4[%c0_42, %c0_43, %c0_44] : memref<1x8x128xi32, #tpu.memory_space<vmem>>, vector<1x8x128xi32>
    %463 = vector.shape_cast %462 : vector<1x8x128xi32> to vector<8x128xi32>
    %464 = vector.shape_cast %461 : vector<8x128xi32> to vector<1x8x128xi32>
    tpu.vector_store %arg4[%c0_42, %c0_43, %c0_44], %464 {strides = array<i32>} : memref<1x8x128xi32, #tpu.memory_space<vmem>>, vector<1x8x128xi32>,
    return
  }
  func.func @transform_0(%arg0: i32, %arg1: i32) -> (i32, i32, i32) {
    %c0_i32 = arith.constant 0 : i32
    %c0_i32_0 = arith.constant 0 : i32
    %c0_i32_1 = arith.constant 0 : i32
    return %arg0, %c0_i32, %c0_i32_0 : i32, i32, i32
  }
  func.func @transform_1(%arg0: i32, %arg1: i32) -> (i32, i32, i32) {
    %c0_i32 = arith.constant 0 : i32
    %c0_i32_0 = arith.constant 0 : i32
    return %arg0, %c0_i32, %arg1 : i32, i32, i32
  }
  func.func @transform_2(%arg0: i32, %arg1: i32) -> (i32, i32, i32) {
    %c0_i32 = arith.constant 0 : i32
    %c0_i32_0 = arith.constant 0 : i32
    return %arg0, %c0_i32, %arg1 : i32, i32, i32
  }
}

</mosaic_0001>

<llo_original>
// kernel: tpu_custom_call.1
$region0: #{tpu_custom_call.1}
  #allocation0 [shape = 'u32[]', space=smem, size = 0x4, offset = 0x4, fixed_abs, tag = 'smem constant byte address 0x4 - core index']
  #allocation1 [shape = 'u32[144,128]{1,0:T(1,128)}', space=vmem, size = 0x12000, scoped, tag = 'internal scratch']
  %s0 = inlined_call_operand.vmem [shape: f32[2,16,3], index: 0, kind: input, shape index: {}]
  %s1 = inlined_call_operand.vmem [shape: f32[2,3,128], index: 1, kind: input, shape index: {}]
  %s2 = inlined_call_operand.hbm [shape: s32[2,8,128], index: 2, kind: output, shape index: {}]
  %s3 = sld [smem:[#allocation0]]
  $region41: #{tpu_custom_call.1} parent=0
    _
  %s5 = ssub.s32 1, %s3
  %s6 = scalar_select 0, %s5, %s3
  $region1: #{tpu_custom_call.1} parent=0
    #allocation2 [shape = 'u8[8192]{0}', space=vmem, size = 0x2000, scoped, tag = 'output window, operand 0']
    #allocation3 [shape = 's32[2]{0}', space=sflag, size = 0x8, scoped, tag = 'scoped memory for tpu_custom_call.1']
    %7 = vsyncpa [#allocation3], 0
    %s8 = scalar_lea.sflag [#allocation3], 1
    %9 = vsyncpa %s8, 0
    loop: start=0, step=1, limit=4
    $region2: #{tpu_custom_call.1} parent=1 // loop_pre_header
      _
    $region3: #{tpu_custom_call.1} parent=1 // loop_header
      %s11 = sphi 0, %s15
      %p12 = scmp.ge.s32.totalorder %s11, 4
      %s18 = sphi 0, %s30
      %s19 = sphi 0, %s26
      %s20 = sphi 0, %s18
      %s21 = sphi 0, %s19
      %s22 = sphi 0, %s20
      %s23 = sphi 0, %s21
      %s33 = sphi 0, %s35
      %s36 = sphi 0, %s33
      %s37 = sphi 0, %s36
      %s53 = sphi 0, %s37
      %s61 = sphi 0, %s63
      %s64 = sphi 0, %s61
      %s65 = sphi 0, %s64
      %s81 = sphi 0, %s65
      %s89 = sphi 0, %s91
      %s92 = sphi 0, %s89
      %s93 = sphi 0, %s92
      %s109 = sphi 0, %s93
    $region4: #{tpu_custom_call.1} parent=1 // loop_header_branch
      %14 = sbr.rel (%p12) target = $region8
    $region5: #{tpu_custom_call.1} parent=1 // loop_body
      %s16 = ssub.s32 %s11, 1
      %s17 = ssub.s32 %s11, 2
      %s24 = sadd.s32 1, %s19
      %p25 = scmp.ge.s32.totalorder %s24, 1
      %s26 = scalar_select %p25, 0, %s24
      %s27 = sadd.s32 1, %s18
      %s28 = scalar_select %p25, %s27, %s18
      %p29 = scmp.ge.s32.totalorder %s28, 2
      %s30 = scalar_select %p29, 0, %s28
      %s31 = ssub.s32 %s18, %s30
      %p32 = scmp.eq.s32.totalorder %s31, 0
      %s34 = sadd.s32 %s33, 1
      %s35 = scalar_select %p32, %s33, %s34
      %p38 = pneg %p32
      %p39 = scmp.eq.s32.totalorder %s11, 1
      %p40 = por %p38, %p39
      %p41 = scmp.ne.s32.totalorder %s33, %s36
      %p42 = scmp.eq.s32.totalorder %s11, 0
      %p43 = por %p41, %p42
      %p44 = scmp.ne.s32.totalorder %s33, %s36
      %p45 = scmp.eq.s32.totalorder %s16, 1
      %p46 = por %p44, %p45
      %p47 = scmp.ne.s32.totalorder %s36, %s37
      %p48 = scmp.eq.s32.totalorder %s16, 0
      %p49 = por %p47, %p48
      %p50 = scmp.ne.s32.totalorder %s36, %s37
      %p51 = scmp.eq.s32.totalorder %s17, 1
      %p52 = por %p50, %p51
      %p54 = scmp.ne.s32.totalorder %s37, %s53
      %p55 = scmp.eq.s32.totalorder %s17, 0
      %p56 = por %p54, %p55
      %s57 = ssub.s32 %s18, %s30
      %s58 = ssub.s32 %s19, %s26
      %s59 = sor.u32 %s57, %s58
      %p60 = scmp.eq.s32.totalorder %s59, 0
      %s62 = sadd.s32 %s61, 1
      %s63 = scalar_select %p60, %s61, %s62
      %p66 = pneg %p60
      %p67 = scmp.eq.s32.totalorder %s11, 1
      %p68 = por %p66, %p67
      %p69 = scmp.ne.s32.totalorder %s61, %s64
      %p70 = scmp.eq.s32.totalorder %s11, 0
      %p71 = por %p69, %p70
      %p72 = scmp.ne.s32.totalorder %s61, %s64
      %p73 = scmp.eq.s32.totalorder %s16, 1
      %p74 = por %p72, %p73
      %p75 = scmp.ne.s32.totalorder %s64, %s65
      %p76 = scmp.eq.s32.totalorder %s16, 0
      %p77 = por %p75, %p76
      %p78 = scmp.ne.s32.totalorder %s64, %s65
      %p79 = scmp.eq.s32.totalorder %s17, 1
      %p80 = por %p78, %p79
      %p82 = scmp.ne.s32.totalorder %s65, %s81
      %p83 = scmp.eq.s32.totalorder %s17, 0
      %p84 = por %p82, %p83
      %s85 = ssub.s32 %s18, %s30
      %s86 = ssub.s32 %s19, %s26
      %s87 = sor.u32 %s85, %s86
      %p88 = scmp.eq.s32.totalorder %s87, 0
      %s90 = sadd.s32 %s89, 1
      %s91 = scalar_select %p88, %s89, %s90
      %p94 = pneg %p88
      %p95 = scmp.eq.s32.totalorder %s11, 1
      %p96 = por %p94, %p95
      %p97 = scmp.ne.s32.totalorder %s89, %s92
      %p98 = scmp.eq.s32.totalorder %s11, 0
      %p99 = por %p97, %p98
      %p100 = scmp.ne.s32.totalorder %s89, %s92
      %p101 = scmp.eq.s32.totalorder %s16, 1
      %p102 = por %p100, %p101
      %p103 = scmp.ne.s32.totalorder %s92, %s93
      %p104 = scmp.eq.s32.totalorder %s16, 0
      %p105 = por %p103, %p104
      %p106 = scmp.ne.s32.totalorder %s92, %s93
      %p107 = scmp.eq.s32.totalorder %s17, 1
      %p108 = por %p106, %p107
      %p110 = scmp.ne.s32.totalorder %s93, %s109
      %p111 = scmp.eq.s32.totalorder %s17, 0
      %p112 = por %p110, %p111
      %p113 = scmp.le.s32.totalorder 1, %s11
      %p114 = scmp.lt.s32.totalorder %s11, 3
      %p115 = pnand %p113, %p114
      %p116 = pneg %p115
      // Predicated region
      $region9: #{tpu_custom_call.1} parent=5 // pred_check
        _
      $region10: #{tpu_custom_call.1} parent=5 // pred_check_branch
        %118 = sbr.rel (%p115) target = $region12
      $region11: #{tpu_custom_call.1} parent=5 // pred_region
        %s119 = ssub.s32 %s11, 1
      $region12: #{tpu_custom_call.1} parent=5 // pred_fallthru
        _
      %p120 = scmp.lt.s32.totalorder %s11, 2
      // Predicated region
      $region13: #{tpu_custom_call.1} parent=5 // pred_check
        %p121 = pneg %p120
      $region14: #{tpu_custom_call.1} parent=5 // pred_check_branch
        %123 = sbr.rel (%p121) target = $region16
      $region15: #{tpu_custom_call.1} parent=5 // pred_region
        // Predicated region
        $region17: #{tpu_custom_call.1} parent=15 // pred_check
          %p124 = pneg %p43
        $region18: #{tpu_custom_call.1} parent=15 // pred_check_branch
          %126 = sbr.rel (%p124) target = $region20
        $region19: #{tpu_custom_call.1} parent=15 // pred_region
          %p127 = scmp.lt.s32.totalorder %s18, 1
          %s128 = scalar_select %p127, %s18, 1
          %s129 = smul.addr %s128, 2
          %s130 = smul.addr %s129, 8
          %s131 = scalar_lea.vmem %s0, %s130
        $region20: #{tpu_custom_call.1} parent=15 // pred_fallthru
          _
        // Predicated region
        $region21: #{tpu_custom_call.1} parent=15 // pred_check
          %p132 = pneg %p71
        $region22: #{tpu_custom_call.1} parent=15 // pred_check_branch
          %134 = sbr.rel (%p132) target = $region24
        $region23: #{tpu_custom_call.1} parent=15 // pred_region
          %p135 = scmp.lt.s32.totalorder %s18, 1
          %s136 = scalar_select %p135, %s18, 1
          %p137 = scmp.lt.s32.totalorder %s19, 0
          %s138 = scalar_select %p137, %s19, 0
          %s139 = sadd.s32 %s138, %s136
          %s140 = smul.addr %s139, 4
          %s141 = scalar_lea.vmem %s1, %s140
        $region24: #{tpu_custom_call.1} parent=15 // pred_fallthru
          _
      $region16: #{tpu_custom_call.1} parent=5 // pred_fallthru
        _
      %p142 = scmp.le.s32.totalorder 1, %s11
      %p143 = scmp.lt.s32.totalorder %s11, 3
      %p144 = pnand %p142, %p143
      %p145 = pneg %p144
      // Predicated region
      $region25: #{tpu_custom_call.1} parent=5 // pred_check
        _
      $region26: #{tpu_custom_call.1} parent=5 // pred_check_branch
        %147 = sbr.rel (%p144) target = $region28
      $region27: #{tpu_custom_call.1} parent=5 // pred_region
        %s148 = ssub.s32 %s11, 1
        %p149 = scmp.lt.s32.totalorder %s20, 1
        %s150 = scalar_select %p149, %s20, 1
        %s151 = smul.addr %s150, 2
        %s152 = smul.addr %s151, 8
        %s153 = scalar_lea.vmem %s0, %s152
        %p154 = pneg %p49
        %p155 = pneg %p46
        %p156 = scmp.lt.s32.totalorder %s20, 1
        %s157 = scalar_select %p156, %s20, 1
        %p158 = scmp.lt.s32.totalorder %s21, 0
        %s159 = scalar_select %p158, %s21, 0
        %s160 = sadd.s32 %s159, %s157
        %s161 = smul.addr %s160, 4
        %s162 = scalar_lea.vmem %s1, %s161
        %p163 = pneg %p77
        %p164 = pneg %p74
        %p165 = pneg %p105
        %p166 = pneg %p102
        %s167 = sand.u32 %s92, 1
        %s168 = scalar_lea.sflag [#allocation3], %s167
        %s169 = sand.u32 %s92, 1
        %s170 = smul.addr %s169, 8
        %s171 = scalar_lea.vmem [#allocation2], %s170
        %p172 = scmp.lt.s32.totalorder %s20, 1
        %s173 = scalar_select %p172, %s20, 1
        %s174 = smul.addr %s173, 2
        %s175 = smul.addr %s174, 8
        %s176 = scalar_lea.vmem %s0, %s175
        %p177 = scmp.lt.s32.totalorder %s20, 1
        %s178 = scalar_select %p177, %s20, 1
        %p179 = scmp.lt.s32.totalorder %s21, 0
        %s180 = scalar_select %p179, %s21, 0
        %s181 = sadd.s32 %s180, %s178
        %s182 = smul.addr %s181, 4
        %s183 = scalar_lea.vmem %s1, %s182
        %v184 = vld [vmem:[%s183] sm:$0x7]
        %v185 = vlaneseq
        %v186 = vshrl.u32 %v185, 7
        %v187 = vadd.s32 %v186, 8
        %v188 = vadd.s32 %v186, 16
        %v189 = vld [vmem:[%s176] sm:$0xff]
        %v190 = vld [vmem:[%s176 + $0x8] sm:$0xff]
        %192 = vset.pattern.permute.xlu0 0
        %193 = vperm.xlu0 %192, %v189
        %v194 = vpop.permute.xlu0 %193
        %197 = vset.pattern.permute.xlu0 0
        %198 = vperm.xlu0 %197, %v190
        %v199 = vpop.permute.xlu0 %198
        %v201 = vlaneseq
        %v202 = vshrl.u32 %v201, 7
        %v203 = vsub.s32 0, %v202
        %v204 = vrot.slane %v184, %v203
        %v205 = vsub.f32 %v194, %v204
        %v206 = vsub.f32 %v199, %v204
        %v207 = vmul.f32 %v205, %v205
        %v208 = vmul.f32 %v206, %v206
        %v209 = vadd.f32 %v207, 0.0
        %v210 = vadd.f32 %v208, 0.0
        %211 = vset.pattern.permute.xlu0 1
        %212 = vperm.xlu0 %211, %v189
        %v213 = vpop.permute.xlu0 %212
        %215 = vset.pattern.permute.xlu0 1
        %216 = vperm.xlu0 %215, %v190
        %v217 = vpop.permute.xlu0 %216
        %v219 = vlaneseq
        %v220 = vshrl.u32 %v219, 7
        %v221 = vsub.s32 1, %v220
        %v222 = vrot.slane %v184, %v221
        %v223 = vsub.f32 %v213, %v222
        %v224 = vsub.f32 %v217, %v222
        %v225 = vmul.f32 %v223, %v223
        %v226 = vmul.f32 %v224, %v224
        %v227 = vadd.f32 %v209, %v225
        %v228 = vadd.f32 %v210, %v226
        %229 = vset.pattern.permute.xlu0 2
        %230 = vperm.xlu0 %229, %v189
        %v231 = vpop.permute.xlu0 %230
        %233 = vset.pattern.permute.xlu0 2
        %234 = vperm.xlu0 %233, %v190
        %v235 = vpop.permute.xlu0 %234
        %v237 = vlaneseq
        %v238 = vshrl.u32 %v237, 7
        %v239 = vsub.s32 2, %v238
        %v240 = vrot.slane %v184, %v239
        %v241 = vsub.f32 %v231, %v240
        %v242 = vsub.f32 %v235, %v240
        %v243 = vmul.f32 %v241, %v241
        %v244 = vmul.f32 %v242, %v242
        %v245 = vadd.f32 %v227, %v243
        %v246 = vadd.f32 %v228, %v244
        %v247 = vstv 0
        %v248 = vadd.s32 %v247, %v186
        %v249 = vadd.s32 %v247, %v187
        %vm250 = vcmp.gt.f32.partialorder %v245, -inf
        %vm251 = vcmp.gt.f32.partialorder %v246, -inf
        %vm252 = vcmp.eq.f32.partialorder %v245, -inf
        %vm253 = vcmp.eq.f32.partialorder %v246, -inf
        %vm254 = vcmp.gt.s32.totalorder %v248, 4294967295
        %vm255 = vcmp.gt.s32.totalorder %v249, 4294967295
        %vm256 = vmand %vm252, %vm254
        %vm257 = vmand %vm253, %vm255
        %vm258 = vmor %vm250, %vm256
        %vm259 = vmor %vm251, %vm257
        %v260 = vsel %vm258, %v245, inf
        %v261 = vsel %vm259, %v246, inf
        %v262 = vmin.f32 %v260, %v261
        %v263 = vrot.slane %v262, 4
        %v264 = vmin.f32 %v262, %v263
        %v265 = vrot.slane %v264, 2
        %v266 = vmin.f32 %v264, %v265
        %v267 = vrot.slane %v266, 1
        %v268 = vmin.f32 %v266, %v267
        %vm269 = vcmp.eq.f32.partialorder %v245, %v268
        %vm270 = vcmp.eq.f32.partialorder %v246, %v268
        %vm271 = vmand %vm258, %vm269
        %vm272 = vmand %vm259, %vm270
        %v273 = vsel %vm271, %v248, 25
        %v274 = vsel %vm272, %v249, 25
        %vm275 = vcmp.lt.s32.totalorder %v273, %v274
        %v276 = vsel %vm275, %v273, %v274
        %v277 = vrot.slane %v276, 4
        %vm278 = vcmp.lt.s32.totalorder %v276, %v277
        %v279 = vsel %vm278, %v276, %v277
        %v280 = vrot.slane %v279, 2
        %vm281 = vcmp.lt.s32.totalorder %v279, %v280
        %v282 = vsel %vm281, %v279, %v280
        %v283 = vrot.slane %v282, 1
        %vm284 = vcmp.lt.s32.totalorder %v282, %v283
        %v285 = vsel %vm284, %v282, %v283
        %vm286 = vcmp.gt.f32.partialorder inf, -inf
        %vm287 = vcmp.eq.f32.partialorder inf, -inf
        %vm288 = vcmp.gt.s32.totalorder %v188, 4294967295
        %vm289 = vmand %vm287, %vm288
        %vm290 = vmor %vm286, %vm289
        %vm291 = vcmp.eq.f32.partialorder inf, inf
        %vm292 = vmand %vm290, %vm291
        %v293 = vsel %vm292, %v188, 25
        %v294 = vrot.slane %v293, 4
        %vm295 = vcmp.lt.s32.totalorder %v293, %v294
        %v296 = vsel %vm295, %v293, %v294
        %v297 = vrot.slane %v296, 2
        %vm298 = vcmp.lt.s32.totalorder %v296, %v297
        %v299 = vsel %vm298, %v296, %v297
        %v300 = vrot.slane %v299, 1
        %vm301 = vcmp.lt.s32.totalorder %v299, %v300
        %v302 = vsel %vm301, %v299, %v300
        %vm303 = vcmp.lt.f32.partialorder %v268, inf
        %vm304 = vcmp.eq.f32.partialorder %v268, inf
        %vm305 = vcmp.lt.s32.totalorder %v285, %v302
        %vm306 = vmand %vm304, %vm305
        %vm307 = vmor %vm303, %vm306
        %v308 = vsel %vm307, %v268, inf
        %v309 = vsel %vm307, %v285, %v302
        %vm310 = vcmp.eq.s32.totalorder %v186, 0
        %v311 = vsel %vm310, %v309, %v188
        %vm312 = vcmp.gt.f32.partialorder %v245, %v308
        %vm313 = vcmp.gt.f32.partialorder %v246, %v308
        %vm314 = vcmp.eq.f32.partialorder %v245, %v308
        %vm315 = vcmp.eq.f32.partialorder %v246, %v308
        %vm316 = vcmp.gt.s32.totalorder %v248, %v309
        %vm317 = vcmp.gt.s32.totalorder %v249, %v309
        %vm318 = vmand %vm314, %vm316
        %vm319 = vmand %vm315, %vm317
        %vm320 = vmor %vm312, %vm318
        %vm321 = vmor %vm313, %vm319
        %v322 = vsel %vm320, %v245, inf
        %v323 = vsel %vm321, %v246, inf
        %v324 = vmin.f32 %v322, %v323
        %v325 = vrot.slane %v324, 4
        %v326 = vmin.f32 %v324, %v325
        %v327 = vrot.slane %v326, 2
        %v328 = vmin.f32 %v326, %v327
        %v329 = vrot.slane %v328, 1
        %v330 = vmin.f32 %v328, %v329
        %vm331 = vcmp.eq.f32.partialorder %v245, %v330
        %vm332 = vcmp.eq.f32.partialorder %v246, %v330
        %vm333 = vmand %vm320, %vm331
        %vm334 = vmand %vm321, %vm332
        %v335 = vsel %vm333, %v248, 25
        %v336 = vsel %vm334, %v249, 25
        %vm337 = vcmp.lt.s32.totalorder %v335, %v336
        %v338 = vsel %vm337, %v335, %v336
        %v339 = vrot.slane %v338, 4
        %vm340 = vcmp.lt.s32.totalorder %v338, %v339
        %v341 = vsel %vm340, %v338, %v339
        %v342 = vrot.slane %v341, 2
        %vm343 = vcmp.lt.s32.totalorder %v341, %v342
        %v344 = vsel %vm343, %v341, %v342
        %v345 = vrot.slane %v344, 1
        %vm346 = vcmp.lt.s32.totalorder %v344, %v345
        %v347 = vsel %vm346, %v344, %v345
        %vm348 = vcmp.gt.f32.partialorder inf, %v308
        %vm349 = vcmp.eq.f32.partialorder inf, %v308
        %vm350 = vcmp.gt.s32.totalorder %v188, %v309
        %vm351 = vmand %vm349, %vm350
        %vm352 = vmor %vm348, %vm351
        %vm353 = vmand %vm352, %vm291
        %v354 = vsel %vm353, %v188, 25
        %v355 = vrot.slane %v354, 4
        %vm356 = vcmp.lt.s32.totalorder %v354, %v355
        %v357 = vsel %vm356, %v354, %v355
        %v358 = vrot.slane %v357, 2
        %vm359 = vcmp.lt.s32.totalorder %v357, %v358
        %v360 = vsel %vm359, %v357, %v358
        %v361 = vrot.slane %v360, 1
        %vm362 = vcmp.lt.s32.totalorder %v360, %v361
        %v363 = vsel %vm362, %v360, %v361
        %vm364 = vcmp.lt.f32.partialorder %v330, inf
        %vm365 = vcmp.eq.f32.partialorder %v330, inf
        %vm366 = vcmp.lt.s32.totalorder %v347, %v363
        %vm367 = vmand %vm365, %vm366
        %vm368 = vmor %vm364, %vm367
        %v369 = vsel %vm368, %v330, inf
        %v370 = vsel %vm368, %v347, %v363
        %vm371 = vcmp.eq.s32.totalorder %v186, 1
        %v372 = vsel %vm371, %v370, %v311
        %vm373 = vcmp.gt.f32.partialorder %v245, %v369
        %vm374 = vcmp.gt.f32.partialorder %v246, %v369
        %vm375 = vcmp.eq.f32.partialorder %v245, %v369
        %vm376 = vcmp.eq.f32.partialorder %v246, %v369
        %vm377 = vcmp.gt.s32.totalorder %v248, %v370
        %vm378 = vcmp.gt.s32.totalorder %v249, %v370
        %vm379 = vmand %vm375, %vm377
        %vm380 = vmand %vm376, %vm378
        %vm381 = vmor %vm373, %vm379
        %vm382 = vmor %vm374, %vm380
        %v383 = vsel %vm381, %v245, inf
        %v384 = vsel %vm382, %v246, inf
        %v385 = vmin.f32 %v383, %v384
        %v386 = vrot.slane %v385, 4
        %v387 = vmin.f32 %v385, %v386
        %v388 = vrot.slane %v387, 2
        %v389 = vmin.f32 %v387, %v388
        %v390 = vrot.slane %v389, 1
        %v391 = vmin.f32 %v389, %v390
        %vm392 = vcmp.eq.f32.partialorder %v245, %v391
        %vm393 = vcmp.eq.f32.partialorder %v246, %v391
        %vm394 = vmand %vm381, %vm392
        %vm395 = vmand %vm382, %vm393
        %v396 = vsel %vm394, %v248, 25
        %v397 = vsel %vm395, %v249, 25
        %vm398 = vcmp.lt.s32.totalorder %v396, %v397
        %v399 = vsel %vm398, %v396, %v397
        %v400 = vrot.slane %v399, 4
        %vm401 = vcmp.lt.s32.totalorder %v399, %v400
        %v402 = vsel %vm401, %v399, %v400
        %v403 = vrot.slane %v402, 2
        %vm404 = vcmp.lt.s32.totalorder %v402, %v403
        %v405 = vsel %vm404, %v402, %v403
        %v406 = vrot.slane %v405, 1
        %vm407 = vcmp.lt.s32.totalorder %v405, %v406
        %v408 = vsel %vm407, %v405, %v406
        %vm409 = vcmp.gt.f32.partialorder inf, %v369
        %vm410 = vcmp.eq.f32.partialorder inf, %v369
        %vm411 = vcmp.gt.s32.totalorder %v188, %v370
        %vm412 = vmand %vm410, %vm411
        %vm413 = vmor %vm409, %vm412
        %vm414 = vmand %vm413, %vm291
        %v415 = vsel %vm414, %v188, 25
        %v416 = vrot.slane %v415, 4
        %vm417 = vcmp.lt.s32.totalorder %v415, %v416
        %v418 = vsel %vm417, %v415, %v416
        %v419 = vrot.slane %v418, 2
        %vm420 = vcmp.lt.s32.totalorder %v418, %v419
        %v421 = vsel %vm420, %v418, %v419
        %v422 = vrot.slane %v421, 1
        %vm423 = vcmp.lt.s32.totalorder %v421, %v422
        %v424 = vsel %vm423, %v421, %v422
        %vm425 = vcmp.lt.f32.partialorder %v391, inf
        %vm426 = vcmp.eq.f32.partialorder %v391, inf
        %vm427 = vcmp.lt.s32.totalorder %v408, %v424
        %vm428 = vmand %vm426, %vm427
        %vm429 = vmor %vm425, %vm428
        %v430 = vsel %vm429, %v391, inf
        %v431 = vsel %vm429, %v408, %v424
        %vm432 = vcmp.eq.s32.totalorder %v186, 2
        %v433 = vsel %vm432, %v431, %v372
        %vm434 = vcmp.gt.f32.partialorder %v245, %v430
        %vm435 = vcmp.gt.f32.partialorder %v246, %v430
        %vm436 = vcmp.eq.f32.partialorder %v245, %v430
        %vm437 = vcmp.eq.f32.partialorder %v246, %v430
        %vm438 = vcmp.gt.s32.totalorder %v248, %v431
        %vm439 = vcmp.gt.s32.totalorder %v249, %v431
        %vm440 = vmand %vm436, %vm438
        %vm441 = vmand %vm437, %vm439
        %vm442 = vmor %vm434, %vm440
        %vm443 = vmor %vm435, %vm441
        %v444 = vsel %vm442, %v245, inf
        %v445 = vsel %vm443, %v246, inf
        %v446 = vmin.f32 %v444, %v445
        %v447 = vrot.slane %v446, 4
        %v448 = vmin.f32 %v446, %v447
        %v449 = vrot.slane %v448, 2
        %v450 = vmin.f32 %v448, %v449
        %v451 = vrot.slane %v450, 1
        %v452 = vmin.f32 %v450, %v451
        %vm453 = vcmp.eq.f32.partialorder %v245, %v452
        %vm454 = vcmp.eq.f32.partialorder %v246, %v452
        %vm455 = vmand %vm442, %vm453
        %vm456 = vmand %vm443, %vm454
        %v457 = vsel %vm455, %v248, 25
        %v458 = vsel %vm456, %v249, 25
        %vm459 = vcmp.lt.s32.totalorder %v457, %v458
        %v460 = vsel %vm459, %v457, %v458
        %v461 = vrot.slane %v460, 4
        %vm462 = vcmp.lt.s32.totalorder %v460, %v461
        %v463 = vsel %vm462, %v460, %v461
        %v464 = vrot.slane %v463, 2
        %vm465 = vcmp.lt.s32.totalorder %v463, %v464
        %v466 = vsel %vm465, %v463, %v464
        %v467 = vrot.slane %v466, 1
        %vm468 = vcmp.lt.s32.totalorder %v466, %v467
        %v469 = vsel %vm468, %v466, %v467
        %vm470 = vcmp.gt.f32.partialorder inf, %v430
        %vm471 = vcmp.eq.f32.partialorder inf, %v430
        %vm472 = vcmp.gt.s32.totalorder %v188, %v431
        %vm473 = vmand %vm471, %vm472
        %vm474 = vmor %vm470, %vm473
        %vm475 = vmand %vm474, %vm291
        %v476 = vsel %vm475, %v188, 25
        %v477 = vrot.slane %v476, 4
        %vm478 = vcmp.lt.s32.totalorder %v476, %v477
        %v479 = vsel %vm478, %v476, %v477
        %v480 = vrot.slane %v479, 2
        %vm481 = vcmp.lt.s32.totalorder %v479, %v480
        %v482 = vsel %vm481, %v479, %v480
        %v483 = vrot.slane %v482, 1
        %vm484 = vcmp.lt.s32.totalorder %v482, %v483
        %v485 = vsel %vm484, %v482, %v483
        %vm486 = vcmp.lt.f32.partialorder %v452, inf
        %vm487 = vcmp.eq.f32.partialorder %v452, inf
        %vm488 = vcmp.lt.s32.totalorder %v469, %v485
        %vm489 = vmand %vm487, %vm488
        %vm490 = vmor %vm486, %vm489
        %v491 = vsel %vm490, %v452, inf
        %v492 = vsel %vm490, %v469, %v485
        %vm493 = vcmp.eq.s32.totalorder %v186, 3
        %v494 = vsel %vm493, %v492, %v433
        %vm495 = vcmp.gt.f32.partialorder %v245, %v491
        %vm496 = vcmp.gt.f32.partialorder %v246, %v491
        %vm497 = vcmp.eq.f32.partialorder %v245, %v491
        %vm498 = vcmp.eq.f32.partialorder %v246, %v491
        %vm499 = vcmp.gt.s32.totalorder %v248, %v492
        %vm500 = vcmp.gt.s32.totalorder %v249, %v492
        %vm501 = vmand %vm497, %vm499
        %vm502 = vmand %vm498, %vm500
        %vm503 = vmor %vm495, %vm501
        %vm504 = vmor %vm496, %vm502
        %v505 = vsel %vm503, %v245, inf
        %v506 = vsel %vm504, %v246, inf
        %v507 = vmin.f32 %v505, %v506
        %v508 = vrot.slane %v507, 4
        %v509 = vmin.f32 %v507, %v508
        %v510 = vrot.slane %v509, 2
        %v511 = vmin.f32 %v509, %v510
        %v512 = vrot.slane %v511, 1
        %v513 = vmin.f32 %v511, %v512
        %vm514 = vcmp.eq.f32.partialorder %v245, %v513
        %vm515 = vcmp.eq.f32.partialorder %v246, %v513
        %vm516 = vmand %vm503, %vm514
        %vm517 = vmand %vm504, %vm515
        %v518 = vsel %vm516, %v248, 25
        %v519 = vsel %vm517, %v249, 25
        %vm520 = vcmp.lt.s32.totalorder %v518, %v519
        %v521 = vsel %vm520, %v518, %v519
        %v522 = vrot.slane %v521, 4
        %vm523 = vcmp.lt.s32.totalorder %v521, %v522
        %v524 = vsel %vm523, %v521, %v522
        %v525 = vrot.slane %v524, 2
        %vm526 = vcmp.lt.s32.totalorder %v524, %v525
        %v527 = vsel %vm526, %v524, %v525
        %v528 = vrot.slane %v527, 1
        %vm529 = vcmp.lt.s32.totalorder %v527, %v528
        %v530 = vsel %vm529, %v527, %v528
        %vm531 = vcmp.gt.f32.partialorder inf, %v491
        %vm532 = vcmp.eq.f32.partialorder inf, %v491
        %vm533 = vcmp.gt.s32.totalorder %v188, %v492
        %vm534 = vmand %vm532, %vm533
        %vm535 = vmor %vm531, %vm534
        %vm536 = vmand %vm535, %vm291
        %v537 = vsel %vm536, %v188, 25
        %v538 = vrot.slane %v537, 4
        %vm539 = vcmp.lt.s32.totalorder %v537, %v538
        %v540 = vsel %vm539, %v537, %v538
        %v541 = vrot.slane %v540, 2
        %vm542 = vcmp.lt.s32.totalorder %v540, %v541
        %v543 = vsel %vm542, %v540, %v541
        %v544 = vrot.slane %v543, 1
        %vm545 = vcmp.lt.s32.totalorder %v543, %v544
        %v546 = vsel %vm545, %v543, %v544
        %vm547 = vcmp.lt.f32.partialorder %v513, inf
        %vm548 = vcmp.eq.f32.partialorder %v513, inf
        %vm549 = vcmp.lt.s32.totalorder %v530, %v546
        %vm550 = vmand %vm548, %vm549
        %vm551 = vmor %vm547, %vm550
        %v552 = vsel %vm551, %v513, inf
        %v553 = vsel %vm551, %v530, %v546
        %vm554 = vcmp.eq.s32.totalorder %v186, 4
        %v555 = vsel %vm554, %v553, %v494
        %vm556 = vcmp.gt.f32.partialorder %v245, %v552
        %vm557 = vcmp.gt.f32.partialorder %v246, %v552
        %vm558 = vcmp.eq.f32.partialorder %v245, %v552
        %vm559 = vcmp.eq.f32.partialorder %v246, %v552
        %vm560 = vcmp.gt.s32.totalorder %v248, %v553
        %vm561 = vcmp.gt.s32.totalorder %v249, %v553
        %vm562 = vmand %vm558, %vm560
        %vm563 = vmand %vm559, %vm561
        %vm564 = vmor %vm556, %vm562
        %vm565 = vmor %vm557, %vm563
        %v566 = vsel %vm564, %v245, inf
        %v567 = vsel %vm565, %v246, inf
        %v568 = vmin.f32 %v566, %v567
        %v569 = vrot.slane %v568, 4
        %v570 = vmin.f32 %v568, %v569
        %v571 = vrot.slane %v570, 2
        %v572 = vmin.f32 %v570, %v571
        %v573 = vrot.slane %v572, 1
        %v574 = vmin.f32 %v572, %v573
        %vm575 = vcmp.eq.f32.partialorder %v245, %v574
        %vm576 = vcmp.eq.f32.partialorder %v246, %v574
        %vm577 = vmand %vm564, %vm575
        %vm578 = vmand %vm565, %vm576
        %v579 = vsel %vm577, %v248, 25
        %v580 = vsel %vm578, %v249, 25
        %vm581 = vcmp.lt.s32.totalorder %v579, %v580
        %v582 = vsel %vm581, %v579, %v580
        %v583 = vrot.slane %v582, 4
        %vm584 = vcmp.lt.s32.totalorder %v582, %v583
        %v585 = vsel %vm584, %v582, %v583
        %v586 = vrot.slane %v585, 2
        %vm587 = vcmp.lt.s32.totalorder %v585, %v586
        %v588 = vsel %vm587, %v585, %v586
        %v589 = vrot.slane %v588, 1
        %vm590 = vcmp.lt.s32.totalorder %v588, %v589
        %v591 = vsel %vm590, %v588, %v589
        %vm592 = vcmp.gt.f32.partialorder inf, %v552
        %vm593 = vcmp.eq.f32.partialorder inf, %v552
        %vm594 = vcmp.gt.s32.totalorder %v188, %v553
        %vm595 = vmand %vm593, %vm594
        %vm596 = vmor %vm592, %vm595
        %vm597 = vmand %vm596, %vm291
        %v598 = vsel %vm597, %v188, 25
        %v599 = vrot.slane %v598, 4
        %vm600 = vcmp.lt.s32.totalorder %v598, %v599
        %v601 = vsel %vm600, %v598, %v599
        %v602 = vrot.slane %v601, 2
        %vm603 = vcmp.lt.s32.totalorder %v601, %v602
        %v604 = vsel %vm603, %v601, %v602
        %v605 = vrot.slane %v604, 1
        %vm606 = vcmp.lt.s32.totalorder %v604, %v605
        %v607 = vsel %vm606, %v604, %v605
        %vm608 = vcmp.lt.f32.partialorder %v574, inf
        %vm609 = vcmp.eq.f32.partialorder %v574, inf
        %vm610 = vcmp.lt.s32.totalorder %v591, %v607
        %vm611 = vmand %vm609, %vm610
        %vm612 = vmor %vm608, %vm611
        %v613 = vsel %vm612, %v574, inf
        %v614 = vsel %vm612, %v591, %v607
        %vm615 = vcmp.eq.s32.totalorder %v186, 5
        %v616 = vsel %vm615, %v614, %v555
        %vm617 = vcmp.gt.f32.partialorder %v245, %v613
        %vm618 = vcmp.gt.f32.partialorder %v246, %v613
        %vm619 = vcmp.eq.f32.partialorder %v245, %v613
        %vm620 = vcmp.eq.f32.partialorder %v246, %v613
        %vm621 = vcmp.gt.s32.totalorder %v248, %v614
        %vm622 = vcmp.gt.s32.totalorder %v249, %v614
        %vm623 = vmand %vm619, %vm621
        %vm624 = vmand %vm620, %vm622
        %vm625 = vmor %vm617, %vm623
        %vm626 = vmor %vm618, %vm624
        %v627 = vsel %vm625, %v245, inf
        %v628 = vsel %vm626, %v246, inf
        %v629 = vmin.f32 %v627, %v628
        %v630 = vrot.slane %v629, 4
        %v631 = vmin.f32 %v629, %v630
        %v632 = vrot.slane %v631, 2
        %v633 = vmin.f32 %v631, %v632
        %v634 = vrot.slane %v633, 1
        %v635 = vmin.f32 %v633, %v634
        %vm636 = vcmp.eq.f32.partialorder %v245, %v635
        %vm637 = vcmp.eq.f32.partialorder %v246, %v635
        %vm638 = vmand %vm625, %vm636
        %vm639 = vmand %vm626, %vm637
        %v640 = vsel %vm638, %v248, 25
        %v641 = vsel %vm639, %v249, 25
        %vm642 = vcmp.lt.s32.totalorder %v640, %v641
        %v643 = vsel %vm642, %v640, %v641
        %v644 = vrot.slane %v643, 4
        %vm645 = vcmp.lt.s32.totalorder %v643, %v644
        %v646 = vsel %vm645, %v643, %v644
        %v647 = vrot.slane %v646, 2
        %vm648 = vcmp.lt.s32.totalorder %v646, %v647
        %v649 = vsel %vm648, %v646, %v647
        %v650 = vrot.slane %v649, 1
        %vm651 = vcmp.lt.s32.totalorder %v649, %v650
        %v652 = vsel %vm651, %v649, %v650
        %vm653 = vcmp.gt.f32.partialorder inf, %v613
        %vm654 = vcmp.eq.f32.partialorder inf, %v613
        %vm655 = vcmp.gt.s32.totalorder %v188, %v614
        %vm656 = vmand %vm654, %vm655
        %vm657 = vmor %vm653, %vm656
        %vm658 = vmand %vm657, %vm291
        %v659 = vsel %vm658, %v188, 25
        %v660 = vrot.slane %v659, 4
        %vm661 = vcmp.lt.s32.totalorder %v659, %v660
        %v662 = vsel %vm661, %v659, %v660
        %v663 = vrot.slane %v662, 2
        %vm664 = vcmp.lt.s32.totalorder %v662, %v663
        %v665 = vsel %vm664, %v662, %v663
        %v666 = vrot.slane %v665, 1
        %vm667 = vcmp.lt.s32.totalorder %v665, %v666
        %v668 = vsel %vm667, %v665, %v666
        %vm669 = vcmp.lt.f32.partialorder %v635, inf
        %vm670 = vcmp.eq.f32.partialorder %v635, inf
        %vm671 = vcmp.lt.s32.totalorder %v652, %v668
        %vm672 = vmand %vm670, %vm671
        %vm673 = vmor %vm669, %vm672
        %v674 = vsel %vm673, %v635, inf
        %v675 = vsel %vm673, %v652, %v668
        %vm676 = vcmp.eq.s32.totalorder %v186, 6
        %v677 = vsel %vm676, %v675, %v616
        %vm678 = vcmp.gt.f32.partialorder %v245, %v674
        %vm679 = vcmp.gt.f32.partialorder %v246, %v674
        %vm680 = vcmp.eq.f32.partialorder %v245, %v674
        %vm681 = vcmp.eq.f32.partialorder %v246, %v674
        %vm682 = vcmp.gt.s32.totalorder %v248, %v675
        %vm683 = vcmp.gt.s32.totalorder %v249, %v675
        %vm684 = vmand %vm680, %vm682
        %vm685 = vmand %vm681, %vm683
        %vm686 = vmor %vm678, %vm684
        %vm687 = vmor %vm679, %vm685
        %v688 = vsel %vm686, %v245, inf
        %v689 = vsel %vm687, %v246, inf
        %v690 = vmin.f32 %v688, %v689
        %v691 = vrot.slane %v690, 4
        %v692 = vmin.f32 %v690, %v691
        %v693 = vrot.slane %v692, 2
        %v694 = vmin.f32 %v692, %v693
        %v695 = vrot.slane %v694, 1
        %v696 = vmin.f32 %v694, %v695
        %vm697 = vcmp.eq.f32.partialorder %v245, %v696
        %vm698 = vcmp.eq.f32.partialorder %v246, %v696
        %vm699 = vmand %vm686, %vm697
        %vm700 = vmand %vm687, %vm698
        %v701 = vsel %vm699, %v248, 25
        %v702 = vsel %vm700, %v249, 25
        %vm703 = vcmp.lt.s32.totalorder %v701, %v702
        %v704 = vsel %vm703, %v701, %v702
        %v705 = vrot.slane %v704, 4
        %vm706 = vcmp.lt.s32.totalorder %v704, %v705
        %v707 = vsel %vm706, %v704, %v705
        %v708 = vrot.slane %v707, 2
        %vm709 = vcmp.lt.s32.totalorder %v707, %v708
        %v710 = vsel %vm709, %v707, %v708
        %v711 = vrot.slane %v710, 1
        %vm712 = vcmp.lt.s32.totalorder %v710, %v711
        %v713 = vsel %vm712, %v710, %v711
        %vm714 = vcmp.gt.f32.partialorder inf, %v674
        %vm715 = vcmp.eq.f32.partialorder inf, %v674
        %vm716 = vcmp.gt.s32.totalorder %v188, %v675
        %vm717 = vmand %vm715, %vm716
        %vm718 = vmor %vm714, %vm717
        %vm719 = vmand %vm718, %vm291
        %v720 = vsel %vm719, %v188, 25
        %v721 = vrot.slane %v720, 4
        %vm722 = vcmp.lt.s32.totalorder %v720, %v721
        %v723 = vsel %vm722, %v720, %v721
        %v724 = vrot.slane %v723, 2
        %vm725 = vcmp.lt.s32.totalorder %v723, %v724
        %v726 = vsel %vm725, %v723, %v724
        %v727 = vrot.slane %v726, 1
        %vm728 = vcmp.lt.s32.totalorder %v726, %v727
        %v729 = vsel %vm728, %v726, %v727
        %vm730 = vcmp.lt.f32.partialorder %v696, inf
        %vm731 = vcmp.eq.f32.partialorder %v696, inf
        %vm732 = vcmp.lt.s32.totalorder %v713, %v729
        %vm733 = vmand %vm731, %vm732
        %vm734 = vmor %vm730, %vm733
        %v735 = vsel %vm734, %v713, %v729
        %vm736 = vcmp.eq.s32.totalorder %v186, 7
        %v737 = vsel %vm736, %v735, %v677
        %738 = vst [vmem:[%s171] sm:$0xff] %v737
        %s739 = sand.u32 %s92, 1
        %s740 = scalar_lea.sflag [#allocation3], %s739
        %s741 = sand.u32 %s92, 1
        %s742 = smul.addr %s741, 8
        %s743 = scalar_lea.vmem [#allocation2], %s742
        // Predicated region
        $region29: #{tpu_custom_call.1} parent=27 // pred_check
          %p744 = pneg %p102
        $region30: #{tpu_custom_call.1} parent=27 // pred_check_branch
          %746 = sbr.rel (%p744) target = $region32
        $region31: #{tpu_custom_call.1} parent=27 // pred_region
          %s748 = ssub.s32 128, 128
          %749 = vsyncadd %s740, %s748
          %s750 = sadd.s32 %s21, %s20
          %s751 = smul.addr %s750, 128
          %s752 = scalar_lea.hbm %s2, %s751
          %s754 = sshll.u32 %s743, 4
          %s755 = int_to_ptr.vmem [resolvable:$true] %s754
          %757 = dma.vmem_to_hbm [thread:$0]  %s755, 128, %s752, %s740
        $region32: #{tpu_custom_call.1} parent=27 // pred_fallthru
          _
      $region28: #{tpu_custom_call.1} parent=5 // pred_fallthru
        _
      %p758 = scmp.le.s32.totalorder 2, %s11
      // Predicated region
      $region33: #{tpu_custom_call.1} parent=5 // pred_check
        %p759 = pneg %p758
      $region34: #{tpu_custom_call.1} parent=5 // pred_check_branch
        %761 = sbr.rel (%p759) target = $region36
      $region35: #{tpu_custom_call.1} parent=5 // pred_region
        %s762 = ssub.s32 %s11, 2
        // Predicated region
        $region37: #{tpu_custom_call.1} parent=35 // pred_check
          %p763 = pneg %p108
        $region38: #{tpu_custom_call.1} parent=35 // pred_check_branch
          %765 = sbr.rel (%p763) target = $region40
        $region39: #{tpu_custom_call.1} parent=35 // pred_region
          %s766 = sand.u32 %s93, 1
          %s767 = scalar_lea.sflag [#allocation3], %s766
          %s768 = sand.u32 %s93, 1
          %s769 = smul.addr %s768, 8
          %s770 = scalar_lea.vmem [#allocation2], %s769
          %771 = dma.done %s767, 128
        $region40: #{tpu_custom_call.1} parent=35 // pred_fallthru
          _
      $region36: #{tpu_custom_call.1} parent=5 // pred_fallthru
        _
    $region6: #{tpu_custom_call.1} parent=1 // loop_footer
      %s15 = sadd.s32 1, %s11
    $region7: #{tpu_custom_call.1} parent=1 // loop_footer_branch
      %10 = sbr.rel target = $region3
    $region8: #{tpu_custom_call.1} parent=1 // loop_exit
      _
    %772 = vsyncpa [#allocation3], 1
    %s773 = scalar_lea.sflag [#allocation3], 1
    %774 = vsyncpa %s773, 1

</llo_original>
